<compile_context>
chip_gen: v7x
topology: tpu7x:2x2x1
jax: 0.10.0
libtpu: 0.0.40
codegen_flags: <defaults>
</compile_context>

<pallas_src>
import math

import numpy as np
import jax
import jax.numpy as jnp
from jax import lax
from jax.experimental import pallas as pl
from jax.experimental.pallas import tpu as pltpu

LANES = 128  # TPU vreg lane width; all padded feature dims use this.


# ----------------------------------------------------------------------------
# Configuration (plays the role of `args` in the PyTorch module __init__)
# ----------------------------------------------------------------------------
def make_dextra_config(vocab_size=50, map_dim=32, out_dim=64,
                       width_mult=2.0, depth=4, max_groups=4):
    """DeLighT-style group/width schedule for the DExTra unit."""
    in_proj = out_dim // 2
    assert in_proj % max_groups == 0
    mid = (depth + 1) // 2
    groups = []
    for l in range(depth):
        if l < mid:
            groups.append(min(2 ** l, max_groups))
        else:
            groups.append(min(2 ** (depth - 1 - l), max_groups))
    max_w = int(width_mult * in_proj)
    r = 2 * max_groups            # rounding unit => divisible by any group count
    glt_out = []
    for l in range(depth):
        if l == depth - 1:
            w = out_dim // 2
        elif l < mid:
            w = in_proj + (max_w - in_proj) * (l + 1) / mid
        else:
            w = max_w - (max_w - out_dim // 2) * (l + 1 - mid) / (depth - mid)
        glt_out.append(int(round(w / r) * r))
    glt_in = [in_proj] + [glt_out[l - 1] + in_proj for l in range(1, depth)]
    out_layer_in = glt_out[-1] + in_proj
    assert max(map_dim, out_dim, in_proj, max(glt_out), out_layer_in) <= LANES
    return dict(vocab_size=vocab_size, map_dim=map_dim, out_dim=out_dim,
                in_proj=in_proj, depth=depth, groups=groups,
                glt_in=glt_in, glt_out=glt_out, out_layer_in=out_layer_in,
                embed_scale=math.sqrt(map_dim))   # no_scale_embedding=False


# ----------------------------------------------------------------------------
# Deterministic parameter initialization (synthetic weights, no checkpoint),
# kept in the original PyTorch-like grouped layout; folding happens below.
# ----------------------------------------------------------------------------
def init_params(key, cfg):
    keys = jax.random.split(key, 3 + cfg["depth"])

    def dense(k, fan_in, shape):
        return jax.random.normal(k, shape, jnp.float32) / math.sqrt(fan_in)

    emb = jax.random.normal(keys[0], (cfg["vocab_size"], cfg["map_dim"]),
                            jnp.float32) * cfg["map_dim"] ** -0.5

    params = []
    # input projection: Linear(map_dim -> in_proj) [+bias] + LayerNorm(g, b)
    params += [dense(keys[1], cfg["map_dim"], (cfg["map_dim"], cfg["in_proj"])),
               jnp.zeros((1, cfg["in_proj"]), jnp.float32),
               jnp.ones((1, cfg["in_proj"]), jnp.float32),
               jnp.zeros((1, cfg["in_proj"]), jnp.float32)]
    # GLT layers: weight [g, in/g, out/g], bias [g, 1, out/g], LN(gamma, beta)
    for l in range(cfg["depth"]):
        g = cfg["groups"][l]
        n = cfg["glt_in"][l] // g
        m = cfg["glt_out"][l] // g
        params += [dense(keys[2 + l], n, (g, n, m)),
                   jnp.zeros((g, 1, m), jnp.float32),
                   jnp.ones((1, cfg["glt_out"][l]), jnp.float32),
                   jnp.zeros((1, cfg["glt_out"][l]), jnp.float32)]
    # output projection: Linear(out_layer_in -> out_dim) [+bias] + LayerNorm
    params += [dense(keys[2 + cfg["depth"]], cfg["out_layer_in"],
                     (cfg["out_layer_in"], cfg["out_dim"])),
               jnp.zeros((1, cfg["out_dim"]), jnp.float32),
               jnp.ones((1, cfg["out_dim"]), jnp.float32),
               jnp.zeros((1, cfg["out_dim"]), jnp.float32)]
    return emb, params


# ----------------------------------------------------------------------------
# Shared math helpers (used by the kernel and by the pure-JAX references)
# ----------------------------------------------------------------------------
def gelu(v):
    # TODO(synk): torch nn.GELU() default is the exact erf GELU.
    c = math.sqrt(2.0 / math.pi)
    return 0.5 * v * (1.0 + jnp.tanh(c * (v + 0.044715 * v * v * v)))


def layer_norm(v, gamma, beta, eps=1e-5):
    mu = jnp.mean(v, axis=-1, keepdims=True)
    var = jnp.mean(jnp.square(v - mu), axis=-1, keepdims=True)
    return (v - mu) * lax.rsqrt(var + eps) * gamma + beta


def masked_ln(v, gamma, beta, lane, real, eps=1e-5):
    """LayerNorm over the first `real` of LANES padded columns.
    Padded columns of `v` are exactly zero (padded weight columns and biases
    are zero), and padded output columns stay exactly zero (padded beta is
    zero), so zero-padding is preserved end to end."""
    inv_n = 1.0 / float(real)
    mu = jnp.sum(v, axis=-1, keepdims=True) * inv_n
    c = jnp.where(lane < real, v - mu, 0.0)
    var = jnp.sum(c * c, axis=-1, keepdims=True) * inv_n
    return c * lax.rsqrt(var + eps) * gamma + beta


# ----------------------------------------------------------------------------
# Host-side weight folding:
#   - block-diagonal fuse of each GLT layer's grouped weights
#   - DeLighT input-mixer interleave permutation folded into weight rows
#   - split every folded weight into its h-part and y-part (no lane concat)
#   - zero-pad every weight to (128, 128) / every row-vector to (1, 128) so
#     the kernel is fully lane-dense                                      [P2]
#   - embed_scale folded into the input projection weight                 [P4]
#   - matmul weights + emb table cast to bf16; LN/bias vectors stay f32
# ----------------------------------------------------------------------------
def _mixer_perm(in_proj, y_width, gn):
    """plain = concat([h, y]); returns perm with mixed[:, k] = plain[:, perm[k]]."""
    hp, yp = in_proj // gn, y_width // gn
    perm = []
    for j in range(gn):
        perm.extend(range(j * hp, (j + 1) * hp))
        perm.extend(range(in_proj + j * yp, in_proj + (j + 1) * yp))
    return np.asarray(perm, np.int64)


def _pad_mat(a, rows=LANES, cols=LANES):
    a = np.asarray(a, np.float32)
    out = np.zeros((rows, cols), np.float32)
    out[:a.shape[0], :a.shape[1]] = a
    return out


def _pad_row(a, cols=LANES, fill=0.0):
    a = np.asarray(a, np.float32).reshape(1, -1)
    out = np.full((1, cols), fill, np.float32)
    out[:, :a.shape[1]] = a
    return out


def fold_params_padded(cfg, emb, params):
    depth, in_proj = cfg["depth"], cfg["in_proj"]
    bf16 = lambda a: jnp.asarray(a, jnp.bfloat16)
    f32 = lambda a: jnp.asarray(a, jnp.float32)

    vocab_p = ((cfg["vocab_size"] + LANES - 1) // LANES) * LANES
    emb_pad = bf16(_pad_mat(emb, vocab_p, LANES))                 # (Vp, 128)

    out, p = [], 0
    w_in, b_in, g_in, be_in = params[p:p + 4]; p += 4
    # fold embed_scale into the weight (f32, before bf16 cast)         [P4]
    out += [bf16(_pad_mat(np.asarray(w_in, np.float32) * cfg["embed_scale"])),
            f32(_pad_row(b_in)),
            f32(_pad_row(g_in, fill=1.0)), f32(_pad_row(be_in))]

    for l in range(depth):
        wg, bg, gg, bb = params[p:p + 4]; p += 4
        wg = np.asarray(wg, np.float32)                           # (g, n, m)
        g, n, m = wg.shape
        bd = np.zeros((g * n, g * m), np.float32)                 # block-diagonal
        for j in range(g):
            bd[j * n:(j + 1) * n, j * m:(j + 1) * m] = wg[j]
        bias = _pad_row(np.asarray(bg, np.float32).reshape(1, g * m))
        if l == 0:
            out += [bf16(_pad_mat(bd)), f32(bias),
                    f32(_pad_row(gg, fill=1.0)), f32(_pad_row(bb))]
        else:
            # previous mixer interleaved concat([h, y_{l-1}]) with gn=groups[l];
            # fold that permutation into the weight rows, then split h/y parts.
            perm = _mixer_perm(in_proj, cfg["glt_out"][l - 1], cfg["groups"][l])
            bd = bd[np.argsort(perm), :]
            out += [bf16(_pad_mat(bd[:in_proj, :])),
                    bf16(_pad_mat(bd[in_proj:, :])),
                    f32(bias),
                    f32(_pad_row(gg, fill=1.0)), f32(_pad_row(bb))]

    w_o, b_o, g_o, be_o = params[p:p + 4]; p += 4
    w_o = np.asarray(w_o, np.float32)                             # rows = [h ; y_last]
    out += [bf16(_pad_mat(w_o[:in_proj, :])), bf16(_pad_mat(w_o[in_proj:, :])),
            f32(_pad_row(b_o)),
            f32(_pad_row(g_o, fill=1.0)), f32(_pad_row(be_o))]
    return emb_pad, out


# ----------------------------------------------------------------------------
# DExTra-unit math on 128-lane-padded operands.  Used verbatim by the Pallas
# kernel (on loaded refs) and by the folded pure-JAX reference check.
# ----------------------------------------------------------------------------
def dextra_math(x_bf, prm, cfg):
    depth = cfg["depth"]
    n = x_bf.shape[0]
    lane = lax.broadcasted_iota(jnp.int32, (n, LANES), 1)

    p = 0
    w_in, b_in, g_in, be_in = prm[p:p + 4]; p += 4
    h = jnp.dot(x_bf, w_in, preferred_element_type=jnp.float32) + b_in
    h = gelu(masked_ln(h, g_in, be_in, lane, cfg["in_proj"]))
    h_bf = h.astype(jnp.bfloat16)                      # reused by every layer

    w0, b0, g0, be0 = prm[p:p + 4]; p += 4
    y = jnp.dot(h_bf, w0, preferred_element_type=jnp.float32) + b0
    y = gelu(masked_ln(y, g0, be0, lane, cfg["glt_out"][0]))

    for l in range(1, depth):
        wh, wy, bl, gl, bel = prm[p:p + 5]; p += 5
        pre = (jnp.dot(h_bf, wh, preferred_element_type=jnp.float32)
               + jnp.dot(y.astype(jnp.bfloat16), wy,
                         preferred_element_type=jnp.float32)
               + bl)
        y = gelu(masked_ln(pre, gl, bel, lane, cfg["glt_out"][l]))

    wo_h, wo_y, bo, go, beo = prm[p:p + 5]; p += 5
    z = (jnp.dot(h_bf, wo_h, preferred_element_type=jnp.float32)
         + jnp.dot(y.astype(jnp.bfloat16), wo_y,
                   preferred_element_type=jnp.float32)
         + bo)
    return gelu(masked_ln(z, go, beo, lane, cfg["out_dim"]))


# ----------------------------------------------------------------------------
# Pallas kernel: whole DExTraEmb forward for one tile of tm token rows
# ----------------------------------------------------------------------------
def build_kernel(cfg):
    n_params = 4 + 4 + 5 * (cfg["depth"] - 1) + 5

    def kernel(ids_ref, emb_ref, *rest):
        out_ref = rest[-1]
        assert len(rest) - 1 == n_params
        prm = [r[...] for r in rest[:-1]]

        tm = ids_ref.shape[0]
        vp = emb_ref.shape[0]

        # -------- embedding lookup: one-hot MXU matmul against the
        #          VMEM-resident padded table.                        [P1]
        # ids outside [0, vocab) select a zero row (graceful, no OOB DMA).
        ids = ids_ref[...]                                    # (tm, 1) int32
        vocab_iota = lax.broadcasted_iota(jnp.int32, (tm, vp), 1)
        one_hot = (ids == vocab_iota).astype(jnp.float32).astype(jnp.bfloat16)
        x_bf = jnp.dot(one_hot, emb_ref[...],
                       preferred_element_type=jnp.float32).astype(jnp.bfloat16)

        # -------- DExTra unit: lane-dense bf16 matmuls, f32 LN/GELU  [P2]
        z = dextra_math(x_bf, prm, cfg)                       # (tm, 128) f32
        out_ref[...] = z.astype(out_ref.dtype)

    return kernel


# ----------------------------------------------------------------------------
# Wrapper: adaptive padding, BlockSpecs, pallas_call
# ----------------------------------------------------------------------------
def dextra_emb_forward(token_ids, emb_pad, folded, cfg, tm_max=1024):
    B, T = token_ids.shape
    E = cfg["out_dim"]
    M = B * T

    # adaptive row tile: multiple of 8 sublanes, at most tm_max          [P3]
    tm = int(min(tm_max, ((M + 7) // 8) * 8))
    grid_len = int(pl.cdiv(M, tm))
    Mp = grid_len * tm

    # padded rows use id 0 (a valid vocab entry); their outputs are sliced off.
    ids = jnp.zeros((Mp, 1), jnp.int32)
    ids = ids.at[:M, 0].set(token_ids.reshape(-1).astype(jnp.int32))

    kernel = build_kernel(cfg)

    in_specs = [pl.BlockSpec((tm, 1), lambda i: (i, 0)),            # token ids
                pl.BlockSpec(emb_pad.shape, lambda i: (0, 0))]      # emb table [P1]
    # TODO(synk): pipeline_mode=pl.Buffered(1) would single-buffer these
    # constant weight blocks (tiny win); left at the default for portability.
    in_specs += [pl.BlockSpec(prm.shape, lambda i: (0, 0)) for prm in folded]

    out = pl.pallas_call(
        kernel,
        out_shape=jax.ShapeDtypeStruct((Mp, LANES), jnp.float32),
        grid=(grid_len,),
        in_specs=in_specs,
        out_specs=pl.BlockSpec((tm, LANES), lambda i: (i, 0)),      # lane-dense [P2]
        compiler_params=pltpu.CompilerParams(
            dimension_semantics=("parallel",),      # v7x 2-TC shard when grid>=2
            vmem_limit_bytes=32 * 1024 * 1024),     # safe on v7x's 64 MiB   [P5]
    )(ids, emb_pad, *folded)

    return out[:M, :E].reshape(B, T, E)


# ----------------------------------------------------------------------------
# Reference 1 (tight): same folded/padded bf16 weights, identical op order.
# Validates the Pallas mechanics (gather, specs, masked LN, store).
# ----------------------------------------------------------------------------
def folded_reference(token_ids, emb_pad, folded, cfg):
    ids = token_ids.reshape(-1)
    x_bf = jnp.take(emb_pad, ids, axis=0)                   # (M, 128) bf16
    return dextra_math(x_bf, list(folded), cfg)             # (M, 128) f32


# ----------------------------------------------------------------------------
# Reference 2 (semantic): ORIGINAL grouped + interleaved-mixer structure with
# bf16-rounded weights/activations, f32 LN/GELU.  Validates the block-diagonal
# fuse, mixer-permutation fold, padding and embed_scale fold.
# ----------------------------------------------------------------------------
def reference_forward(token_ids, emb, params, cfg):
    q = lambda a: jnp.asarray(a).astype(jnp.bfloat16).astype(jnp.float32)
    hi = jax.lax.Precision.HIGHEST
    ids = token_ids.reshape(-1)
    x = q(emb)[ids] * cfg["embed_scale"]

    p = 0
    w, b, g_, be = params[p:p + 4]; p += 4
    h = jnp.dot(x, q(w), precision=hi) + b
    h = gelu(layer_norm(h, g_, be))

    out = h
    for l in range(cfg["depth"]):
        wg, bg, gg, bb = params[p:p + 4]; p += 4
        g = cfg["groups"][l]
        n = out.shape[-1] // g
        oq = q(out)
        pieces = [jnp.dot(oq[:, j * n:(j + 1) * n], q(wg[j]), precision=hi)
                  + bg[j] for j in range(g)]
        y = pieces[0] if g == 1 else jnp.concatenate(pieces, axis=-1)
        y = gelu(layer_norm(y, gg, bb))

        gn = cfg["groups"][l + 1] if l < cfg["depth"] - 1 else 1
        hp = cfg["in_proj"] // gn
        yp = y.shape[-1] // gn
        mixed = []
        for j in range(gn):
            mixed.append(h[:, j * hp:(j + 1) * hp])
            mixed.append(y[:, j * yp:(j + 1) * yp])
        out = jnp.concatenate(mixed, axis=-1)

    w, b, g_, be = params[p:p + 4]
    z = jnp.dot(q(out), q(w), precision=hi) + b
    return gelu(layer_norm(z, g_, be))


# ----------------------------------------------------------------------------
if __name__ == "__main__":
    cfg = make_dextra_config(vocab_size=50, map_dim=32, out_dim=64,
                             width_mult=2.0, depth=4, max_groups=4)
    key = jax.random.PRNGKey(0)
    k_ids, k_params = jax.random.split(key)
    emb, params = init_params(k_params, cfg)
    emb_pad, folded = fold_params_padded(cfg, emb, params)

    B, T = 2, 8
    token_ids = jax.random.randint(k_ids, (B, T), 0, cfg["vocab_size"],
                                   dtype=jnp.int32)

    y = dextra_emb_forward(token_ids, emb_pad, folded, cfg, tm_max=1024)
    y = jax.block_until_ready(y)

    assert y.shape == (B, T, cfg["out_dim"]), y.shape
    assert bool(jnp.all(jnp.isfinite(y)))

    # (1) tight structural check against the identical folded-weight math.
    ref_fold = folded_reference(token_ids, emb_pad, folded, cfg)
    ref_fold = ref_fold[:, :cfg["out_dim"]].reshape(B, T, cfg["out_dim"])
    err_fold = float(jnp.max(jnp.abs(y - ref_fold)))
    assert err_fold < 2e-3, f"kernel vs folded reference max abs err = {err_fold}"

    # (2) semantic check against the original grouped + mixer structure.
    ref_sem = reference_forward(token_ids, emb, params, cfg)
    ref_sem = ref_sem.reshape(B, T, cfg["out_dim"])
    err_sem = float(jnp.max(jnp.abs(y - ref_sem)))
    assert err_sem < 5e-2, f"kernel vs grouped reference max abs err = {err_sem}"

    print("KERNEL_OK")
</pallas_src>

<mosaic_0001>
module attributes {stable_mosaic.version = 11 : i64} {
  func.func @kernel(%arg0: i32, %arg1: memref<16x1xi32, #tpu.memory_space<vmem>>, %arg2: memref<128x128xbf16, #tpu.memory_space<vmem>>, %arg3: memref<128x128xbf16, #tpu.memory_space<vmem>>, %arg4: memref<1x128xf32, #tpu.memory_space<vmem>>, %arg5: memref<1x128xf32, #tpu.memory_space<vmem>>, %arg6: memref<1x128xf32, #tpu.memory_space<vmem>>, %arg7: memref<128x128xbf16, #tpu.memory_space<vmem>>, %arg8: memref<1x128xf32, #tpu.memory_space<vmem>>, %arg9: memref<1x128xf32, #tpu.memory_space<vmem>>, %arg10: memref<1x128xf32, #tpu.memory_space<vmem>>, %arg11: memref<128x128xbf16, #tpu.memory_space<vmem>>, %arg12: memref<128x128xbf16, #tpu.memory_space<vmem>>, %arg13: memref<1x128xf32, #tpu.memory_space<vmem>>, %arg14: memref<1x128xf32, #tpu.memory_space<vmem>>, %arg15: memref<1x128xf32, #tpu.memory_space<vmem>>, %arg16: memref<128x128xbf16, #tpu.memory_space<vmem>>, %arg17: memref<128x128xbf16, #tpu.memory_space<vmem>>, %arg18: memref<1x128xf32, #tpu.memory_space<vmem>>, %arg19: memref<1x128xf32, #tpu.memory_space<vmem>>, %arg20: memref<1x128xf32, #tpu.memory_space<vmem>>, %arg21: memref<128x128xbf16, #tpu.memory_space<vmem>>, %arg22: memref<128x128xbf16, #tpu.memory_space<vmem>>, %arg23: memref<1x128xf32, #tpu.memory_space<vmem>>, %arg24: memref<1x128xf32, #tpu.memory_space<vmem>>, %arg25: memref<1x128xf32, #tpu.memory_space<vmem>>, %arg26: memref<128x128xbf16, #tpu.memory_space<vmem>>, %arg27: memref<128x128xbf16, #tpu.memory_space<vmem>>, %arg28: memref<1x128xf32, #tpu.memory_space<vmem>>, %arg29: memref<1x128xf32, #tpu.memory_space<vmem>>, %arg30: memref<1x128xf32, #tpu.memory_space<vmem>>, %arg31: memref<16x128xf32, #tpu.memory_space<vmem>>) attributes {dimension_semantics = [#tpu.dimension_semantics<parallel>], iteration_bounds = array<i64: 1>, scalar_prefetch = 0 : i64, scratch_operands = 0 : i64, tpu.core_type = #tpu.core_type<tc>, window_params = [{transform_indices = @transform_0, window_bounds = array<i64: 16, 1>}, {pipeline_mode = #tpu.pipeline_mode<synchronous>, transform_indices = @transform_1, window_bounds = array<i64: 128, 128>}, {pipeline_mode = #tpu.pipeline_mode<synchronous>, transform_indices = @transform_2, window_bounds = array<i64: 128, 128>}, {pipeline_mode = #tpu.pipeline_mode<synchronous>, transform_indices = @transform_3, window_bounds = array<i64: 1, 128>}, {pipeline_mode = #tpu.pipeline_mode<synchronous>, transform_indices = @transform_4, window_bounds = array<i64: 1, 128>}, {pipeline_mode = #tpu.pipeline_mode<synchronous>, transform_indices = @transform_5, window_bounds = array<i64: 1, 128>}, {pipeline_mode = #tpu.pipeline_mode<synchronous>, transform_indices = @transform_6, window_bounds = array<i64: 128, 128>}, {pipeline_mode = #tpu.pipeline_mode<synchronous>, transform_indices = @transform_7, window_bounds = array<i64: 1, 128>}, {pipeline_mode = #tpu.pipeline_mode<synchronous>, transform_indices = @transform_8, window_bounds = array<i64: 1, 128>}, {pipeline_mode = #tpu.pipeline_mode<synchronous>, transform_indices = @transform_9, window_bounds = array<i64: 1, 128>}, {pipeline_mode = #tpu.pipeline_mode<synchronous>, transform_indices = @transform_10, window_bounds = array<i64: 128, 128>}, {pipeline_mode = #tpu.pipeline_mode<synchronous>, transform_indices = @transform_11, window_bounds = array<i64: 128, 128>}, {pipeline_mode = #tpu.pipeline_mode<synchronous>, transform_indices = @transform_12, window_bounds = array<i64: 1, 128>}, {pipeline_mode = #tpu.pipeline_mode<synchronous>, transform_indices = @transform_13, window_bounds = array<i64: 1, 128>}, {pipeline_mode = #tpu.pipeline_mode<synchronous>, transform_indices = @transform_14, window_bounds = array<i64: 1, 128>}, {pipeline_mode = #tpu.pipeline_mode<synchronous>, transform_indices = @transform_15, window_bounds = array<i64: 128, 128>}, {pipeline_mode = #tpu.pipeline_mode<synchronous>, transform_indices = @transform_16, window_bounds = array<i64: 128, 128>}, {pipeline_mode = #tpu.pipeline_mode<synchronous>, transform_indices = @transform_17, window_bounds = array<i64: 1, 128>}, {pipeline_mode = #tpu.pipeline_mode<synchronous>, transform_indices = @transform_18, window_bounds = array<i64: 1, 128>}, {pipeline_mode = #tpu.pipeline_mode<synchronous>, transform_indices = @transform_19, window_bounds = array<i64: 1, 128>}, {pipeline_mode = #tpu.pipeline_mode<synchronous>, transform_indices = @transform_20, window_bounds = array<i64: 128, 128>}, {pipeline_mode = #tpu.pipeline_mode<synchronous>, transform_indices = @transform_21, window_bounds = array<i64: 128, 128>}, {pipeline_mode = #tpu.pipeline_mode<synchronous>, transform_indices = @transform_22, window_bounds = array<i64: 1, 128>}, {pipeline_mode = #tpu.pipeline_mode<synchronous>, transform_indices = @transform_23, window_bounds = array<i64: 1, 128>}, {pipeline_mode = #tpu.pipeline_mode<synchronous>, transform_indices = @transform_24, window_bounds = array<i64: 1, 128>}, {pipeline_mode = #tpu.pipeline_mode<synchronous>, transform_indices = @transform_25, window_bounds = array<i64: 128, 128>}, {pipeline_mode = #tpu.pipeline_mode<synchronous>, transform_indices = @transform_26, window_bounds = array<i64: 128, 128>}, {pipeline_mode = #tpu.pipeline_mode<synchronous>, transform_indices = @transform_27, window_bounds = array<i64: 1, 128>}, {pipeline_mode = #tpu.pipeline_mode<synchronous>, transform_indices = @transform_28, window_bounds = array<i64: 1, 128>}, {pipeline_mode = #tpu.pipeline_mode<synchronous>, transform_indices = @transform_29, window_bounds = array<i64: 1, 128>}, {transform_indices = @transform_30, window_bounds = array<i64: 16, 128>}]} {
    %c0 = arith.constant 0 : index
    %c0_0 = arith.constant 0 : index
    %0 = vector.load %arg3[%c0, %c0_0] : memref<128x128xbf16, #tpu.memory_space<vmem>>, vector<128x128xbf16>
    %c0_1 = arith.constant 0 : index
    %c0_2 = arith.constant 0 : index
    %1 = vector.load %arg4[%c0_1, %c0_2] : memref<1x128xf32, #tpu.memory_space<vmem>>, vector<1x128xf32>
    %c0_3 = arith.constant 0 : index
    %c0_4 = arith.constant 0 : index
    %2 = vector.load %arg5[%c0_3, %c0_4] : memref<1x128xf32, #tpu.memory_space<vmem>>, vector<1x128xf32>
    %c0_5 = arith.constant 0 : index
    %c0_6 = arith.constant 0 : index
    %3 = vector.load %arg6[%c0_5, %c0_6] : memref<1x128xf32, #tpu.memory_space<vmem>>, vector<1x128xf32>
    %c0_7 = arith.constant 0 : index
    %c0_8 = arith.constant 0 : index
    %4 = vector.load %arg7[%c0_7, %c0_8] : memref<128x128xbf16, #tpu.memory_space<vmem>>, vector<128x128xbf16>
    %c0_9 = arith.constant 0 : index
    %c0_10 = arith.constant 0 : index
    %5 = vector.load %arg8[%c0_9, %c0_10] : memref<1x128xf32, #tpu.memory_space<vmem>>, vector<1x128xf32>
    %c0_11 = arith.constant 0 : index
    %c0_12 = arith.constant 0 : index
    %6 = vector.load %arg9[%c0_11, %c0_12] : memref<1x128xf32, #tpu.memory_space<vmem>>, vector<1x128xf32>
    %c0_13 = arith.constant 0 : index
    %c0_14 = arith.constant 0 : index
    %7 = vector.load %arg10[%c0_13, %c0_14] : memref<1x128xf32, #tpu.memory_space<vmem>>, vector<1x128xf32>
    %c0_15 = arith.constant 0 : index
    %c0_16 = arith.constant 0 : index
    %8 = vector.load %arg11[%c0_15, %c0_16] : memref<128x128xbf16, #tpu.memory_space<vmem>>, vector<128x128xbf16>
    %c0_17 = arith.constant 0 : index
    %c0_18 = arith.constant 0 : index
    %9 = vector.load %arg12[%c0_17, %c0_18] : memref<128x128xbf16, #tpu.memory_space<vmem>>, vector<128x128xbf16>
    %c0_19 = arith.constant 0 : index
    %c0_20 = arith.constant 0 : index
    %10 = vector.load %arg13[%c0_19, %c0_20] : memref<1x128xf32, #tpu.memory_space<vmem>>, vector<1x128xf32>
    %c0_21 = arith.constant 0 : index
    %c0_22 = arith.constant 0 : index
    %11 = vector.load %arg14[%c0_21, %c0_22] : memref<1x128xf32, #tpu.memory_space<vmem>>, vector<1x128xf32>
    %c0_23 = arith.constant 0 : index
    %c0_24 = arith.constant 0 : index
    %12 = vector.load %arg15[%c0_23, %c0_24] : memref<1x128xf32, #tpu.memory_space<vmem>>, vector<1x128xf32>
    %c0_25 = arith.constant 0 : index
    %c0_26 = arith.constant 0 : index
    %13 = vector.load %arg16[%c0_25, %c0_26] : memref<128x128xbf16, #tpu.memory_space<vmem>>, vector<128x128xbf16>
    %c0_27 = arith.constant 0 : index
    %c0_28 = arith.constant 0 : index
    %14 = vector.load %arg17[%c0_27, %c0_28] : memref<128x128xbf16, #tpu.memory_space<vmem>>, vector<128x128xbf16>
    %c0_29 = arith.constant 0 : index
    %c0_30 = arith.constant 0 : index
    %15 = vector.load %arg18[%c0_29, %c0_30] : memref<1x128xf32, #tpu.memory_space<vmem>>, vector<1x128xf32>
    %c0_31 = arith.constant 0 : index
    %c0_32 = arith.constant 0 : index
    %16 = vector.load %arg19[%c0_31, %c0_32] : memref<1x128xf32, #tpu.memory_space<vmem>>, vector<1x128xf32>
    %c0_33 = arith.constant 0 : index
    %c0_34 = arith.constant 0 : index
    %17 = vector.load %arg20[%c0_33, %c0_34] : memref<1x128xf32, #tpu.memory_space<vmem>>, vector<1x128xf32>
    %c0_35 = arith.constant 0 : index
    %c0_36 = arith.constant 0 : index
    %18 = vector.load %arg21[%c0_35, %c0_36] : memref<128x128xbf16, #tpu.memory_space<vmem>>, vector<128x128xbf16>
    %c0_37 = arith.constant 0 : index
    %c0_38 = arith.constant 0 : index
    %19 = vector.load %arg22[%c0_37, %c0_38] : memref<128x128xbf16, #tpu.memory_space<vmem>>, vector<128x128xbf16>
    %c0_39 = arith.constant 0 : index
    %c0_40 = arith.constant 0 : index
    %20 = vector.load %arg23[%c0_39, %c0_40] : memref<1x128xf32, #tpu.memory_space<vmem>>, vector<1x128xf32>
    %c0_41 = arith.constant 0 : index
    %c0_42 = arith.constant 0 : index
    %21 = vector.load %arg24[%c0_41, %c0_42] : memref<1x128xf32, #tpu.memory_space<vmem>>, vector<1x128xf32>
    %c0_43 = arith.constant 0 : index
    %c0_44 = arith.constant 0 : index
    %22 = vector.load %arg25[%c0_43, %c0_44] : memref<1x128xf32, #tpu.memory_space<vmem>>, vector<1x128xf32>
    %c0_45 = arith.constant 0 : index
    %c0_46 = arith.constant 0 : index
    %23 = vector.load %arg26[%c0_45, %c0_46] : memref<128x128xbf16, #tpu.memory_space<vmem>>, vector<128x128xbf16>
    %c0_47 = arith.constant 0 : index
    %c0_48 = arith.constant 0 : index
    %24 = vector.load %arg27[%c0_47, %c0_48] : memref<128x128xbf16, #tpu.memory_space<vmem>>, vector<128x128xbf16>
    %c0_49 = arith.constant 0 : index
    %c0_50 = arith.constant 0 : index
    %25 = vector.load %arg28[%c0_49, %c0_50] : memref<1x128xf32, #tpu.memory_space<vmem>>, vector<1x128xf32>
    %c0_51 = arith.constant 0 : index
    %c0_52 = arith.constant 0 : index
    %26 = vector.load %arg29[%c0_51, %c0_52] : memref<1x128xf32, #tpu.memory_space<vmem>>, vector<1x128xf32>
    %c0_53 = arith.constant 0 : index
    %c0_54 = arith.constant 0 : index
    %27 = vector.load %arg30[%c0_53, %c0_54] : memref<1x128xf32, #tpu.memory_space<vmem>>, vector<1x128xf32>
    %c0_55 = arith.constant 0 : index
    %c0_56 = arith.constant 0 : index
    %28 = vector.load %arg1[%c0_55, %c0_56] : memref<16x1xi32, #tpu.memory_space<vmem>>, vector<16x1xi32>
    %29 = tpu.iota {dimensions = array<i32: 1>} : vector<16x128xi32>
    %30 = vector.broadcast %28 : vector<16x1xi32> to vector<16x128xi32>
    %31 = arith.cmpi eq, %30, %29 : vector<16x128xi32>
    %32 = arith.extui %31 : vector<16x128xi1> to vector<16x128xi32>
    %33 = arith.sitofp %32 : vector<16x128xi32> to vector<16x128xf32>
    %34 = arith.truncf %33 : vector<16x128xf32> to vector<16x128xbf16>
    %c0_57 = arith.constant 0 : index
    %c0_58 = arith.constant 0 : index
    %35 = vector.load %arg2[%c0_57, %c0_58] : memref<128x128xbf16, #tpu.memory_space<vmem>>, vector<128x128xbf16>
    %cst = arith.constant dense<0.000000e+00> : vector<16x128xf32>
    %36 = tpu.matmul %34, %35, %cst {dimension_numbers = #tpu.dot_dimension_numbers<[1], [0], [0], [1], [0, 0, 1, 1], [], []>} : vector<16x128xbf16>, vector<128x128xbf16>, vector<16x128xf32> -> vector<16x128xf32>
    %37 = arith.truncf %36 : vector<16x128xf32> to vector<16x128xbf16>
    %38 = tpu.iota {dimensions = array<i32: 1>} : vector<16x128xi32>
    %cst_59 = arith.constant dense<0.000000e+00> : vector<16x128xf32>
    %39 = tpu.matmul %37, %0, %cst_59 {dimension_numbers = #tpu.dot_dimension_numbers<[1], [0], [0], [1], [0, 0, 1, 1], [], []>} : vector<16x128xbf16>, vector<128x128xbf16>, vector<16x128xf32> -> vector<16x128xf32>
    %40 = vector.broadcast %1 : vector<1x128xf32> to vector<16x128xf32>
    %41 = arith.addf %39, %40 : vector<16x128xf32>
    %cst_60 = arith.constant dense<0.000000e+00> : vector<16xf32>
    %42 = vector.multi_reduction <add>, %41, %cst_60 [1] : vector<16x128xf32> to vector<16xf32>
    %43 = vector.shape_cast %42 : vector<16xf32> to vector<16x1xf32>
    %cst_61 = arith.constant 3.125000e-02 : f32
    %44 = vector.broadcast %cst_61 : f32 to vector<16x1xf32>
    %45 = arith.mulf %43, %44 : vector<16x1xf32>
    %c32_i32 = arith.constant 32 : i32
    %46 = vector.broadcast %c32_i32 : i32 to vector<16x128xi32>
    %47 = arith.cmpi slt, %38, %46 : vector<16x128xi32>
    %48 = vector.broadcast %45 : vector<16x1xf32> to vector<16x128xf32>
    %49 = arith.subf %41, %48 : vector<16x128xf32>
    %cst_62 = arith.constant 0.000000e+00 : f32
    %50 = vector.broadcast %cst_62 : f32 to vector<16x128xf32>
    %51 = arith.select %47, %49, %50 : vector<16x128xi1>, vector<16x128xf32>
    %52 = arith.mulf %51, %51 : vector<16x128xf32>
    %cst_63 = arith.constant dense<0.000000e+00> : vector<16xf32>
    %53 = vector.multi_reduction <add>, %52, %cst_63 [1] : vector<16x128xf32> to vector<16xf32>
    %54 = vector.shape_cast %53 : vector<16xf32> to vector<16x1xf32>
    %cst_64 = arith.constant 3.125000e-02 : f32
    %55 = vector.broadcast %cst_64 : f32 to vector<16x1xf32>
    %56 = arith.mulf %54, %55 : vector<16x1xf32>
    %cst_65 = arith.constant 9.99999974E-6 : f32
    %57 = vector.broadcast %cst_65 : f32 to vector<16x1xf32>
    %58 = arith.addf %56, %57 : vector<16x1xf32>
    %59 = math.rsqrt %58 : vector<16x1xf32>
    %60 = vector.broadcast %59 : vector<16x1xf32> to vector<16x128xf32>
    %61 = arith.mulf %51, %60 : vector<16x128xf32>
    %62 = vector.broadcast %2 : vector<1x128xf32> to vector<16x128xf32>
    %63 = arith.mulf %61, %62 : vector<16x128xf32>
    %64 = vector.broadcast %3 : vector<1x128xf32> to vector<16x128xf32>
    %65 = arith.addf %63, %64 : vector<16x128xf32>
    %cst_66 = arith.constant 5.000000e-01 : f32
    %66 = vector.broadcast %cst_66 : f32 to vector<16x128xf32>
    %67 = arith.mulf %66, %65 : vector<16x128xf32>
    %cst_67 = arith.constant 4.471500e-02 : f32
    %68 = vector.broadcast %cst_67 : f32 to vector<16x128xf32>
    %69 = arith.mulf %68, %65 : vector<16x128xf32>
    %70 = arith.mulf %69, %65 : vector<16x128xf32>
    %71 = arith.mulf %70, %65 : vector<16x128xf32>
    %72 = arith.addf %65, %71 : vector<16x128xf32>
    %cst_68 = arith.constant 0.797884583 : f32
    %73 = vector.broadcast %cst_68 : f32 to vector<16x128xf32>
    %74 = arith.mulf %73, %72 : vector<16x128xf32>
    %75 = math.tanh %74 : vector<16x128xf32>
    %cst_69 = arith.constant 1.000000e+00 : f32
    %76 = vector.broadcast %cst_69 : f32 to vector<16x128xf32>
    %77 = arith.addf %76, %75 : vector<16x128xf32>
    %78 = arith.mulf %67, %77 : vector<16x128xf32>
    %79 = arith.truncf %78 : vector<16x128xf32> to vector<16x128xbf16>
    %cst_70 = arith.constant dense<0.000000e+00> : vector<16x128xf32>
    %80 = tpu.matmul %79, %4, %cst_70 {dimension_numbers = #tpu.dot_dimension_numbers<[1], [0], [0], [1], [0, 0, 1, 1], [], []>} : vector<16x128xbf16>, vector<128x128xbf16>, vector<16x128xf32> -> vector<16x128xf32>
    %81 = vector.broadcast %5 : vector<1x128xf32> to vector<16x128xf32>
    %82 = arith.addf %80, %81 : vector<16x128xf32>
    %cst_71 = arith.constant dense<0.000000e+00> : vector<16xf32>
    %83 = vector.multi_reduction <add>, %82, %cst_71 [1] : vector<16x128xf32> to vector<16xf32>
    %84 = vector.shape_cast %83 : vector<16xf32> to vector<16x1xf32>
    %cst_72 = arith.constant 0.020833334 : f32
    %85 = vector.broadcast %cst_72 : f32 to vector<16x1xf32>
    %86 = arith.mulf %84, %85 : vector<16x1xf32>
    %c48_i32 = arith.constant 48 : i32
    %87 = vector.broadcast %c48_i32 : i32 to vector<16x128xi32>
    %88 = arith.cmpi slt, %38, %87 : vector<16x128xi32>
    %89 = vector.broadcast %86 : vector<16x1xf32> to vector<16x128xf32>
    %90 = arith.subf %82, %89 : vector<16x128xf32>
    %cst_73 = arith.constant 0.000000e+00 : f32
    %91 = vector.broadcast %cst_73 : f32 to vector<16x128xf32>
    %92 = arith.select %88, %90, %91 : vector<16x128xi1>, vector<16x128xf32>
    %93 = arith.mulf %92, %92 : vector<16x128xf32>
    %cst_74 = arith.constant dense<0.000000e+00> : vector<16xf32>
    %94 = vector.multi_reduction <add>, %93, %cst_74 [1] : vector<16x128xf32> to vector<16xf32>
    %95 = vector.shape_cast %94 : vector<16xf32> to vector<16x1xf32>
    %cst_75 = arith.constant 0.020833334 : f32
    %96 = vector.broadcast %cst_75 : f32 to vector<16x1xf32>
    %97 = arith.mulf %95, %96 : vector<16x1xf32>
    %cst_76 = arith.constant 9.99999974E-6 : f32
    %98 = vector.broadcast %cst_76 : f32 to vector<16x1xf32>
    %99 = arith.addf %97, %98 : vector<16x1xf32>
    %100 = math.rsqrt %99 : vector<16x1xf32>
    %101 = vector.broadcast %100 : vector<16x1xf32> to vector<16x128xf32>
    %102 = arith.mulf %92, %101 : vector<16x128xf32>
    %103 = vector.broadcast %6 : vector<1x128xf32> to vector<16x128xf32>
    %104 = arith.mulf %102, %103 : vector<16x128xf32>
    %105 = vector.broadcast %7 : vector<1x128xf32> to vector<16x128xf32>
    %106 = arith.addf %104, %105 : vector<16x128xf32>
    %cst_77 = arith.constant 5.000000e-01 : f32
    %107 = vector.broadcast %cst_77 : f32 to vector<16x128xf32>
    %108 = arith.mulf %107, %106 : vector<16x128xf32>
    %cst_78 = arith.constant 4.471500e-02 : f32
    %109 = vector.broadcast %cst_78 : f32 to vector<16x128xf32>
    %110 = arith.mulf %109, %106 : vector<16x128xf32>
    %111 = arith.mulf %110, %106 : vector<16x128xf32>
    %112 = arith.mulf %111, %106 : vector<16x128xf32>
    %113 = arith.addf %106, %112 : vector<16x128xf32>
    %cst_79 = arith.constant 0.797884583 : f32
    %114 = vector.broadcast %cst_79 : f32 to vector<16x128xf32>
    %115 = arith.mulf %114, %113 : vector<16x128xf32>
    %116 = math.tanh %115 : vector<16x128xf32>
    %cst_80 = arith.constant 1.000000e+00 : f32
    %117 = vector.broadcast %cst_80 : f32 to vector<16x128xf32>
    %118 = arith.addf %117, %116 : vector<16x128xf32>
    %119 = arith.mulf %108, %118 : vector<16x128xf32>
    %cst_81 = arith.constant dense<0.000000e+00> : vector<16x128xf32>
    %120 = tpu.matmul %79, %8, %cst_81 {dimension_numbers = #tpu.dot_dimension_numbers<[1], [0], [0], [1], [0, 0, 1, 1], [], []>} : vector<16x128xbf16>, vector<128x128xbf16>, vector<16x128xf32> -> vector<16x128xf32>
    %121 = arith.truncf %119 : vector<16x128xf32> to vector<16x128xbf16>
    %cst_82 = arith.constant dense<0.000000e+00> : vector<16x128xf32>
    %122 = tpu.matmul %121, %9, %cst_82 {dimension_numbers = #tpu.dot_dimension_numbers<[1], [0], [0], [1], [0, 0, 1, 1], [], []>} : vector<16x128xbf16>, vector<128x128xbf16>, vector<16x128xf32> -> vector<16x128xf32>
    %123 = arith.addf %120, %122 : vector<16x128xf32>
    %124 = vector.broadcast %10 : vector<1x128xf32> to vector<16x128xf32>
    %125 = arith.addf %123, %124 : vector<16x128xf32>
    %cst_83 = arith.constant dense<0.000000e+00> : vector<16xf32>
    %126 = vector.multi_reduction <add>, %125, %cst_83 [1] : vector<16x128xf32> to vector<16xf32>
    %127 = vector.shape_cast %126 : vector<16xf32> to vector<16x1xf32>
    %cst_84 = arith.constant 1.562500e-02 : f32
    %128 = vector.broadcast %cst_84 : f32 to vector<16x1xf32>
    %129 = arith.mulf %127, %128 : vector<16x1xf32>
    %c64_i32 = arith.constant 64 : i32
    %130 = vector.broadcast %c64_i32 : i32 to vector<16x128xi32>
    %131 = arith.cmpi slt, %38, %130 : vector<16x128xi32>
    %132 = vector.broadcast %129 : vector<16x1xf32> to vector<16x128xf32>
    %133 = arith.subf %125, %132 : vector<16x128xf32>
    %cst_85 = arith.constant 0.000000e+00 : f32
    %134 = vector.broadcast %cst_85 : f32 to vector<16x128xf32>
    %135 = arith.select %131, %133, %134 : vector<16x128xi1>, vector<16x128xf32>
    %136 = arith.mulf %135, %135 : vector<16x128xf32>
    %cst_86 = arith.constant dense<0.000000e+00> : vector<16xf32>
    %137 = vector.multi_reduction <add>, %136, %cst_86 [1] : vector<16x128xf32> to vector<16xf32>
    %138 = vector.shape_cast %137 : vector<16xf32> to vector<16x1xf32>
    %cst_87 = arith.constant 1.562500e-02 : f32
    %139 = vector.broadcast %cst_87 : f32 to vector<16x1xf32>
    %140 = arith.mulf %138, %139 : vector<16x1xf32>
    %cst_88 = arith.constant 9.99999974E-6 : f32
    %141 = vector.broadcast %cst_88 : f32 to vector<16x1xf32>
    %142 = arith.addf %140, %141 : vector<16x1xf32>
    %143 = math.rsqrt %142 : vector<16x1xf32>
    %144 = vector.broadcast %143 : vector<16x1xf32> to vector<16x128xf32>
    %145 = arith.mulf %135, %144 : vector<16x128xf32>
    %146 = vector.broadcast %11 : vector<1x128xf32> to vector<16x128xf32>
    %147 = arith.mulf %145, %146 : vector<16x128xf32>
    %148 = vector.broadcast %12 : vector<1x128xf32> to vector<16x128xf32>
    %149 = arith.addf %147, %148 : vector<16x128xf32>
    %cst_89 = arith.constant 5.000000e-01 : f32
    %150 = vector.broadcast %cst_89 : f32 to vector<16x128xf32>
    %151 = arith.mulf %150, %149 : vector<16x128xf32>
    %cst_90 = arith.constant 4.471500e-02 : f32
    %152 = vector.broadcast %cst_90 : f32 to vector<16x128xf32>
    %153 = arith.mulf %152, %149 : vector<16x128xf32>
    %154 = arith.mulf %153, %149 : vector<16x128xf32>
    %155 = arith.mulf %154, %149 : vector<16x128xf32>
    %156 = arith.addf %149, %155 : vector<16x128xf32>
    %cst_91 = arith.constant 0.797884583 : f32
    %157 = vector.broadcast %cst_91 : f32 to vector<16x128xf32>
    %158 = arith.mulf %157, %156 : vector<16x128xf32>
    %159 = math.tanh %158 : vector<16x128xf32>
    %cst_92 = arith.constant 1.000000e+00 : f32
    %160 = vector.broadcast %cst_92 : f32 to vector<16x128xf32>
    %161 = arith.addf %160, %159 : vector<16x128xf32>
    %162 = arith.mulf %151, %161 : vector<16x128xf32>
    %cst_93 = arith.constant dense<0.000000e+00> : vector<16x128xf32>
    %163 = tpu.matmul %79, %13, %cst_93 {dimension_numbers = #tpu.dot_dimension_numbers<[1], [0], [0], [1], [0, 0, 1, 1], [], []>} : vector<16x128xbf16>, vector<128x128xbf16>, vector<16x128xf32> -> vector<16x128xf32>
    %164 = arith.truncf %162 : vector<16x128xf32> to vector<16x128xbf16>
    %cst_94 = arith.constant dense<0.000000e+00> : vector<16x128xf32>
    %165 = tpu.matmul %164, %14, %cst_94 {dimension_numbers = #tpu.dot_dimension_numbers<[1], [0], [0], [1], [0, 0, 1, 1], [], []>} : vector<16x128xbf16>, vector<128x128xbf16>, vector<16x128xf32> -> vector<16x128xf32>
    %166 = arith.addf %163, %165 : vector<16x128xf32>
    %167 = vector.broadcast %15 : vector<1x128xf32> to vector<16x128xf32>
    %168 = arith.addf %166, %167 : vector<16x128xf32>
    %cst_95 = arith.constant dense<0.000000e+00> : vector<16xf32>
    %169 = vector.multi_reduction <add>, %168, %cst_95 [1] : vector<16x128xf32> to vector<16xf32>
    %170 = vector.shape_cast %169 : vector<16xf32> to vector<16x1xf32>
    %cst_96 = arith.constant 0.020833334 : f32
    %171 = vector.broadcast %cst_96 : f32 to vector<16x1xf32>
    %172 = arith.mulf %170, %171 : vector<16x1xf32>
    %c48_i32_97 = arith.constant 48 : i32
    %173 = vector.broadcast %c48_i32_97 : i32 to vector<16x128xi32>
    %174 = arith.cmpi slt, %38, %173 : vector<16x128xi32>
    %175 = vector.broadcast %172 : vector<16x1xf32> to vector<16x128xf32>
    %176 = arith.subf %168, %175 : vector<16x128xf32>
    %cst_98 = arith.constant 0.000000e+00 : f32
    %177 = vector.broadcast %cst_98 : f32 to vector<16x128xf32>
    %178 = arith.select %174, %176, %177 : vector<16x128xi1>, vector<16x128xf32>
    %179 = arith.mulf %178, %178 : vector<16x128xf32>
    %cst_99 = arith.constant dense<0.000000e+00> : vector<16xf32>
    %180 = vector.multi_reduction <add>, %179, %cst_99 [1] : vector<16x128xf32> to vector<16xf32>
    %181 = vector.shape_cast %180 : vector<16xf32> to vector<16x1xf32>
    %cst_100 = arith.constant 0.020833334 : f32
    %182 = vector.broadcast %cst_100 : f32 to vector<16x1xf32>
    %183 = arith.mulf %181, %182 : vector<16x1xf32>
    %cst_101 = arith.constant 9.99999974E-6 : f32
    %184 = vector.broadcast %cst_101 : f32 to vector<16x1xf32>
    %185 = arith.addf %183, %184 : vector<16x1xf32>
    %186 = math.rsqrt %185 : vector<16x1xf32>
    %187 = vector.broadcast %186 : vector<16x1xf32> to vector<16x128xf32>
    %188 = arith.mulf %178, %187 : vector<16x128xf32>
    %189 = vector.broadcast %16 : vector<1x128xf32> to vector<16x128xf32>
    %190 = arith.mulf %188, %189 : vector<16x128xf32>
    %191 = vector.broadcast %17 : vector<1x128xf32> to vector<16x128xf32>
    %192 = arith.addf %190, %191 : vector<16x128xf32>
    %cst_102 = arith.constant 5.000000e-01 : f32
    %193 = vector.broadcast %cst_102 : f32 to vector<16x128xf32>
    %194 = arith.mulf %193, %192 : vector<16x128xf32>
    %cst_103 = arith.constant 4.471500e-02 : f32
    %195 = vector.broadcast %cst_103 : f32 to vector<16x128xf32>
    %196 = arith.mulf %195, %192 : vector<16x128xf32>
    %197 = arith.mulf %196, %192 : vector<16x128xf32>
    %198 = arith.mulf %197, %192 : vector<16x128xf32>
    %199 = arith.addf %192, %198 : vector<16x128xf32>
    %cst_104 = arith.constant 0.797884583 : f32
    %200 = vector.broadcast %cst_104 : f32 to vector<16x128xf32>
    %201 = arith.mulf %200, %199 : vector<16x128xf32>
    %202 = math.tanh %201 : vector<16x128xf32>
    %cst_105 = arith.constant 1.000000e+00 : f32
    %203 = vector.broadcast %cst_105 : f32 to vector<16x128xf32>
    %204 = arith.addf %203, %202 : vector<16x128xf32>
    %205 = arith.mulf %194, %204 : vector<16x128xf32>
    %cst_106 = arith.constant dense<0.000000e+00> : vector<16x128xf32>
    %206 = tpu.matmul %79, %18, %cst_106 {dimension_numbers = #tpu.dot_dimension_numbers<[1], [0], [0], [1], [0, 0, 1, 1], [], []>} : vector<16x128xbf16>, vector<128x128xbf16>, vector<16x128xf32> -> vector<16x128xf32>
    %207 = arith.truncf %205 : vector<16x128xf32> to vector<16x128xbf16>
    %cst_107 = arith.constant dense<0.000000e+00> : vector<16x128xf32>
    %208 = tpu.matmul %207, %19, %cst_107 {dimension_numbers = #tpu.dot_dimension_numbers<[1], [0], [0], [1], [0, 0, 1, 1], [], []>} : vector<16x128xbf16>, vector<128x128xbf16>, vector<16x128xf32> -> vector<16x128xf32>
    %209 = arith.addf %206, %208 : vector<16x128xf32>
    %210 = vector.broadcast %20 : vector<1x128xf32> to vector<16x128xf32>
    %211 = arith.addf %209, %210 : vector<16x128xf32>
    %cst_108 = arith.constant dense<0.000000e+00> : vector<16xf32>
    %212 = vector.multi_reduction <add>, %211, %cst_108 [1] : vector<16x128xf32> to vector<16xf32>
    %213 = vector.shape_cast %212 : vector<16xf32> to vector<16x1xf32>
    %cst_109 = arith.constant 3.125000e-02 : f32
    %214 = vector.broadcast %cst_109 : f32 to vector<16x1xf32>
    %215 = arith.mulf %213, %214 : vector<16x1xf32>
    %c32_i32_110 = arith.constant 32 : i32
    %216 = vector.broadcast %c32_i32_110 : i32 to vector<16x128xi32>
    %217 = arith.cmpi slt, %38, %216 : vector<16x128xi32>
    %218 = vector.broadcast %215 : vector<16x1xf32> to vector<16x128xf32>
    %219 = arith.subf %211, %218 : vector<16x128xf32>
    %cst_111 = arith.constant 0.000000e+00 : f32
    %220 = vector.broadcast %cst_111 : f32 to vector<16x128xf32>
    %221 = arith.select %217, %219, %220 : vector<16x128xi1>, vector<16x128xf32>
    %222 = arith.mulf %221, %221 : vector<16x128xf32>
    %cst_112 = arith.constant dense<0.000000e+00> : vector<16xf32>
    %223 = vector.multi_reduction <add>, %222, %cst_112 [1] : vector<16x128xf32> to vector<16xf32>
    %224 = vector.shape_cast %223 : vector<16xf32> to vector<16x1xf32>
    %cst_113 = arith.constant 3.125000e-02 : f32
    %225 = vector.broadcast %cst_113 : f32 to vector<16x1xf32>
    %226 = arith.mulf %224, %225 : vector<16x1xf32>
    %cst_114 = arith.constant 9.99999974E-6 : f32
    %227 = vector.broadcast %cst_114 : f32 to vector<16x1xf32>
    %228 = arith.addf %226, %227 : vector<16x1xf32>
    %229 = math.rsqrt %228 : vector<16x1xf32>
    %230 = vector.broadcast %229 : vector<16x1xf32> to vector<16x128xf32>
    %231 = arith.mulf %221, %230 : vector<16x128xf32>
    %232 = vector.broadcast %21 : vector<1x128xf32> to vector<16x128xf32>
    %233 = arith.mulf %231, %232 : vector<16x128xf32>
    %234 = vector.broadcast %22 : vector<1x128xf32> to vector<16x128xf32>
    %235 = arith.addf %233, %234 : vector<16x128xf32>
    %cst_115 = arith.constant 5.000000e-01 : f32
    %236 = vector.broadcast %cst_115 : f32 to vector<16x128xf32>
    %237 = arith.mulf %236, %235 : vector<16x128xf32>
    %cst_116 = arith.constant 4.471500e-02 : f32
    %238 = vector.broadcast %cst_116 : f32 to vector<16x128xf32>
    %239 = arith.mulf %238, %235 : vector<16x128xf32>
    %240 = arith.mulf %239, %235 : vector<16x128xf32>
    %241 = arith.mulf %240, %235 : vector<16x128xf32>
    %242 = arith.addf %235, %241 : vector<16x128xf32>
    %cst_117 = arith.constant 0.797884583 : f32
    %243 = vector.broadcast %cst_117 : f32 to vector<16x128xf32>
    %244 = arith.mulf %243, %242 : vector<16x128xf32>
    %245 = math.tanh %244 : vector<16x128xf32>
    %cst_118 = arith.constant 1.000000e+00 : f32
    %246 = vector.broadcast %cst_118 : f32 to vector<16x128xf32>
    %247 = arith.addf %246, %245 : vector<16x128xf32>
    %248 = arith.mulf %237, %247 : vector<16x128xf32>
    %cst_119 = arith.constant dense<0.000000e+00> : vector<16x128xf32>
    %249 = tpu.matmul %79, %23, %cst_119 {dimension_numbers = #tpu.dot_dimension_numbers<[1], [0], [0], [1], [0, 0, 1, 1], [], []>} : vector<16x128xbf16>, vector<128x128xbf16>, vector<16x128xf32> -> vector<16x128xf32>
    %250 = arith.truncf %248 : vector<16x128xf32> to vector<16x128xbf16>
    %cst_120 = arith.constant dense<0.000000e+00> : vector<16x128xf32>
    %251 = tpu.matmul %250, %24, %cst_120 {dimension_numbers = #tpu.dot_dimension_numbers<[1], [0], [0], [1], [0, 0, 1, 1], [], []>} : vector<16x128xbf16>, vector<128x128xbf16>, vector<16x128xf32> -> vector<16x128xf32>
    %252 = arith.addf %249, %251 : vector<16x128xf32>
    %253 = vector.broadcast %25 : vector<1x128xf32> to vector<16x128xf32>
    %254 = arith.addf %252, %253 : vector<16x128xf32>
    %cst_121 = arith.constant dense<0.000000e+00> : vector<16xf32>
    %255 = vector.multi_reduction <add>, %254, %cst_121 [1] : vector<16x128xf32> to vector<16xf32>
    %256 = vector.shape_cast %255 : vector<16xf32> to vector<16x1xf32>
    %cst_122 = arith.constant 1.562500e-02 : f32
    %257 = vector.broadcast %cst_122 : f32 to vector<16x1xf32>
    %258 = arith.mulf %256, %257 : vector<16x1xf32>
    %c64_i32_123 = arith.constant 64 : i32
    %259 = vector.broadcast %c64_i32_123 : i32 to vector<16x128xi32>
    %260 = arith.cmpi slt, %38, %259 : vector<16x128xi32>
    %261 = vector.broadcast %258 : vector<16x1xf32> to vector<16x128xf32>
    %262 = arith.subf %254, %261 : vector<16x128xf32>
    %cst_124 = arith.constant 0.000000e+00 : f32
    %263 = vector.broadcast %cst_124 : f32 to vector<16x128xf32>
    %264 = arith.select %260, %262, %263 : vector<16x128xi1>, vector<16x128xf32>
    %265 = arith.mulf %264, %264 : vector<16x128xf32>
    %cst_125 = arith.constant dense<0.000000e+00> : vector<16xf32>
    %266 = vector.multi_reduction <add>, %265, %cst_125 [1] : vector<16x128xf32> to vector<16xf32>
    %267 = vector.shape_cast %266 : vector<16xf32> to vector<16x1xf32>
    %cst_126 = arith.constant 1.562500e-02 : f32
    %268 = vector.broadcast %cst_126 : f32 to vector<16x1xf32>
    %269 = arith.mulf %267, %268 : vector<16x1xf32>
    %cst_127 = arith.constant 9.99999974E-6 : f32
    %270 = vector.broadcast %cst_127 : f32 to vector<16x1xf32>
    %271 = arith.addf %269, %270 : vector<16x1xf32>
    %272 = math.rsqrt %271 : vector<16x1xf32>
    %273 = vector.broadcast %272 : vector<16x1xf32> to vector<16x128xf32>
    %274 = arith.mulf %264, %273 : vector<16x128xf32>
    %275 = vector.broadcast %26 : vector<1x128xf32> to vector<16x128xf32>
    %276 = arith.mulf %274, %275 : vector<16x128xf32>
    %277 = vector.broadcast %27 : vector<1x128xf32> to vector<16x128xf32>
    %278 = arith.addf %276, %277 : vector<16x128xf32>
    %cst_128 = arith.constant 5.000000e-01 : f32
    %279 = vector.broadcast %cst_128 : f32 to vector<16x128xf32>
    %280 = arith.mulf %279, %278 : vector<16x128xf32>
    %cst_129 = arith.constant 4.471500e-02 : f32
    %281 = vector.broadcast %cst_129 : f32 to vector<16x128xf32>
    %282 = arith.mulf %281, %278 : vector<16x128xf32>
    %283 = arith.mulf %282, %278 : vector<16x128xf32>
    %284 = arith.mulf %283, %278 : vector<16x128xf32>
    %285 = arith.addf %278, %284 : vector<16x128xf32>
    %cst_130 = arith.constant 0.797884583 : f32
    %286 = vector.broadcast %cst_130 : f32 to vector<16x128xf32>
    %287 = arith.mulf %286, %285 : vector<16x128xf32>
    %288 = math.tanh %287 : vector<16x128xf32>
    %cst_131 = arith.constant 1.000000e+00 : f32
    %289 = vector.broadcast %cst_131 : f32 to vector<16x128xf32>
    %290 = arith.addf %289, %288 : vector<16x128xf32>
    %291 = arith.mulf %280, %290 : vector<16x128xf32>
    %c0_132 = arith.constant 0 : index
    %c0_133 = arith.constant 0 : index
    %292 = vector.load %arg31[%c0_132, %c0_133] : memref<16x128xf32, #tpu.memory_space<vmem>>, vector<16x128xf32>
    tpu.vector_store %arg31[%c0_132, %c0_133], %291 {strides = array<i32>} : memref<16x128xf32, #tpu.memory_space<vmem>>, vector<16x128xf32>,
    return
  }
  func.func @transform_0(%arg0: i32) -> (i32, i32) {
    %c0_i32 = arith.constant 0 : i32
    %c0_i32_0 = arith.constant 0 : i32
    return %arg0, %c0_i32 : i32, i32
  }
  func.func @transform_1(%arg0: i32) -> (i32, i32) {
    %c0_i32 = arith.constant 0 : i32
    %c0_i32_0 = arith.constant 0 : i32
    %c0_i32_1 = arith.constant 0 : i32
    return %c0_i32, %c0_i32_0 : i32, i32
  }
  func.func @transform_2(%arg0: i32) -> (i32, i32) {
    %c0_i32 = arith.constant 0 : i32
    %c0_i32_0 = arith.constant 0 : i32
    %c0_i32_1 = arith.constant 0 : i32
    return %c0_i32, %c0_i32_0 : i32, i32
  }
  func.func @transform_3(%arg0: i32) -> (i32, i32) {
    %c0_i32 = arith.constant 0 : i32
    %c0_i32_0 = arith.constant 0 : i32
    %c0_i32_1 = arith.constant 0 : i32
    return %c0_i32, %c0_i32_0 : i32, i32
  }
  func.func @transform_4(%arg0: i32) -> (i32, i32) {
    %c0_i32 = arith.constant 0 : i32
    %c0_i32_0 = arith.constant 0 : i32
    %c0_i32_1 = arith.constant 0 : i32
    return %c0_i32, %c0_i32_0 : i32, i32
  }
  func.func @transform_5(%arg0: i32) -> (i32, i32) {
    %c0_i32 = arith.constant 0 : i32
    %c0_i32_0 = arith.constant 0 : i32
    %c0_i32_1 = arith.constant 0 : i32
    return %c0_i32, %c0_i32_0 : i32, i32
  }
  func.func @transform_6(%arg0: i32) -> (i32, i32) {
    %c0_i32 = arith.constant 0 : i32
    %c0_i32_0 = arith.constant 0 : i32
    %c0_i32_1 = arith.constant 0 : i32
    return %c0_i32, %c0_i32_0 : i32, i32
  }
  func.func @transform_7(%arg0: i32) -> (i32, i32) {
    %c0_i32 = arith.constant 0 : i32
    %c0_i32_0 = arith.constant 0 : i32
    %c0_i32_1 = arith.constant 0 : i32
    return %c0_i32, %c0_i32_0 : i32, i32
  }
  func.func @transform_8(%arg0: i32) -> (i32, i32) {
    %c0_i32 = arith.constant 0 : i32
    %c0_i32_0 = arith.constant 0 : i32
    %c0_i32_1 = arith.constant 0 : i32
    return %c0_i32, %c0_i32_0 : i32, i32
  }
  func.func @transform_9(%arg0: i32) -> (i32, i32) {
    %c0_i32 = arith.constant 0 : i32
    %c0_i32_0 = arith.constant 0 : i32
    %c0_i32_1 = arith.constant 0 : i32
    return %c0_i32, %c0_i32_0 : i32, i32
  }
  func.func @transform_10(%arg0: i32) -> (i32, i32) {
    %c0_i32 = arith.constant 0 : i32
    %c0_i32_0 = arith.constant 0 : i32
    %c0_i32_1 = arith.constant 0 : i32
    return %c0_i32, %c0_i32_0 : i32, i32
  }
  func.func @transform_11(%arg0: i32) -> (i32, i32) {
    %c0_i32 = arith.constant 0 : i32
    %c0_i32_0 = arith.constant 0 : i32
    %c0_i32_1 = arith.constant 0 : i32
    return %c0_i32, %c0_i32_0 : i32, i32
  }
  func.func @transform_12(%arg0: i32) -> (i32, i32) {
    %c0_i32 = arith.constant 0 : i32
    %c0_i32_0 = arith.constant 0 : i32
    %c0_i32_1 = arith.constant 0 : i32
    return %c0_i32, %c0_i32_0 : i32, i32
  }
  func.func @transform_13(%arg0: i32) -> (i32, i32) {
    %c0_i32 = arith.constant 0 : i32
    %c0_i32_0 = arith.constant 0 : i32
    %c0_i32_1 = arith.constant 0 : i32
    return %c0_i32, %c0_i32_0 : i32, i32
  }
  func.func @transform_14(%arg0: i32) -> (i32, i32) {
    %c0_i32 = arith.constant 0 : i32
    %c0_i32_0 = arith.constant 0 : i32
    %c0_i32_1 = arith.constant 0 : i32
    return %c0_i32, %c0_i32_0 : i32, i32
  }
  func.func @transform_15(%arg0: i32) -> (i32, i32) {
    %c0_i32 = arith.constant 0 : i32
    %c0_i32_0 = arith.constant 0 : i32
    %c0_i32_1 = arith.constant 0 : i32
    return %c0_i32, %c0_i32_0 : i32, i32
  }
  func.func @transform_16(%arg0: i32) -> (i32, i32) {
    %c0_i32 = arith.constant 0 : i32
    %c0_i32_0 = arith.constant 0 : i32
    %c0_i32_1 = arith.constant 0 : i32
    return %c0_i32, %c0_i32_0 : i32, i32
  }
  func.func @transform_17(%arg0: i32) -> (i32, i32) {
    %c0_i32 = arith.constant 0 : i32
    %c0_i32_0 = arith.constant 0 : i32
    %c0_i32_1 = arith.constant 0 : i32
    return %c0_i32, %c0_i32_0 : i32, i32
  }
  func.func @transform_18(%arg0: i32) -> (i32, i32) {
    %c0_i32 = arith.constant 0 : i32
    %c0_i32_0 = arith.constant 0 : i32
    %c0_i32_1 = arith.constant 0 : i32
    return %c0_i32, %c0_i32_0 : i32, i32
  }
  func.func @transform_19(%arg0: i32) -> (i32, i32) {
    %c0_i32 = arith.constant 0 : i32
    %c0_i32_0 = arith.constant 0 : i32
    %c0_i32_1 = arith.constant 0 : i32
    return %c0_i32, %c0_i32_0 : i32, i32
  }
  func.func @transform_20(%arg0: i32) -> (i32, i32) {
    %c0_i32 = arith.constant 0 : i32
    %c0_i32_0 = arith.constant 0 : i32
    %c0_i32_1 = arith.constant 0 : i32
    return %c0_i32, %c0_i32_0 : i32, i32
  }
  func.func @transform_21(%arg0: i32) -> (i32, i32) {
    %c0_i32 = arith.constant 0 : i32
    %c0_i32_0 = arith.constant 0 : i32
    %c0_i32_1 = arith.constant 0 : i32
    return %c0_i32, %c0_i32_0 : i32, i32
  }
  func.func @transform_22(%arg0: i32) -> (i32, i32) {
    %c0_i32 = arith.constant 0 : i32
    %c0_i32_0 = arith.constant 0 : i32
    %c0_i32_1 = arith.constant 0 : i32
    return %c0_i32, %c0_i32_0 : i32, i32
  }
  func.func @transform_23(%arg0: i32) -> (i32, i32) {
    %c0_i32 = arith.constant 0 : i32
    %c0_i32_0 = arith.constant 0 : i32
    %c0_i32_1 = arith.constant 0 : i32
    return %c0_i32, %c0_i32_0 : i32, i32
  }
  func.func @transform_24(%arg0: i32) -> (i32, i32) {
    %c0_i32 = arith.constant 0 : i32
    %c0_i32_0 = arith.constant 0 : i32
    %c0_i32_1 = arith.constant 0 : i32
    return %c0_i32, %c0_i32_0 : i32, i32
  }
  func.func @transform_25(%arg0: i32) -> (i32, i32) {
    %c0_i32 = arith.constant 0 : i32
    %c0_i32_0 = arith.constant 0 : i32
    %c0_i32_1 = arith.constant 0 : i32
    return %c0_i32, %c0_i32_0 : i32, i32
  }
  func.func @transform_26(%arg0: i32) -> (i32, i32) {
    %c0_i32 = arith.constant 0 : i32
    %c0_i32_0 = arith.constant 0 : i32
    %c0_i32_1 = arith.constant 0 : i32
    return %c0_i32, %c0_i32_0 : i32, i32
  }
  func.func @transform_27(%arg0: i32) -> (i32, i32) {
    %c0_i32 = arith.constant 0 : i32
    %c0_i32_0 = arith.constant 0 : i32
    %c0_i32_1 = arith.constant 0 : i32
    return %c0_i32, %c0_i32_0 : i32, i32
  }
  func.func @transform_28(%arg0: i32) -> (i32, i32) {
    %c0_i32 = arith.constant 0 : i32
    %c0_i32_0 = arith.constant 0 : i32
    %c0_i32_1 = arith.constant 0 : i32
    return %c0_i32, %c0_i32_0 : i32, i32
  }
  func.func @transform_29(%arg0: i32) -> (i32, i32) {
    %c0_i32 = arith.constant 0 : i32
    %c0_i32_0 = arith.constant 0 : i32
    %c0_i32_1 = arith.constant 0 : i32
    return %c0_i32, %c0_i32_0 : i32, i32
  }
  func.func @transform_30(%arg0: i32) -> (i32, i32) {
    %c0_i32 = arith.constant 0 : i32
    %c0_i32_0 = arith.constant 0 : i32
    return %arg0, %c0_i32 : i32, i32
  }
}

</mosaic_0001>

<llo_original>
// kernel: tpu_custom_call.1
$region0: #{tpu_custom_call.1}
  #allocation0 [shape = 'u32[]', space=smem, size = 0x4, offset = 0x4, fixed_abs, tag = 'smem constant byte address 0x4 - core index']
  #allocation1 [shape = 'u32[144,128]{1,0:T(1,128)}', space=vmem, size = 0x12000, scoped, tag = 'internal scratch']
  %s0 = inlined_call_operand.smem [shape: u32[31], index: -1, kind: input, shape index: {}]
  %s1 = sld [smem:[%s0]]
  %s2 = scalar_lea.smem %s0, 1
  %s3 = sld [smem:[%s2]]
  %s4 = scalar_lea.smem %s0, 2
  %s5 = sld [smem:[%s4]]
  %s6 = scalar_lea.smem %s0, 3
  %s7 = sld [smem:[%s6]]
  %s8 = scalar_lea.smem %s0, 4
  %s9 = sld [smem:[%s8]]
  %s10 = scalar_lea.smem %s0, 5
  %s11 = sld [smem:[%s10]]
  %s12 = scalar_lea.smem %s0, 6
  %s13 = sld [smem:[%s12]]
  %s14 = scalar_lea.smem %s0, 7
  %s15 = sld [smem:[%s14]]
  %s16 = scalar_lea.smem %s0, 8
  %s17 = sld [smem:[%s16]]
  %s18 = scalar_lea.smem %s0, 9
  %s19 = sld [smem:[%s18]]
  %s20 = scalar_lea.smem %s0, 10
  %s21 = sld [smem:[%s20]]
  %s22 = scalar_lea.smem %s0, 11
  %s23 = sld [smem:[%s22]]
  %s24 = scalar_lea.smem %s0, 12
  %s25 = sld [smem:[%s24]]
  %s26 = scalar_lea.smem %s0, 13
  %s27 = sld [smem:[%s26]]
  %s28 = scalar_lea.smem %s0, 14
  %s29 = sld [smem:[%s28]]
  %s30 = scalar_lea.smem %s0, 15
  %s31 = sld [smem:[%s30]]
  %s32 = scalar_lea.smem %s0, 16
  %s33 = sld [smem:[%s32]]
  %s34 = scalar_lea.smem %s0, 17
  %s35 = sld [smem:[%s34]]
  %s36 = scalar_lea.smem %s0, 18
  %s37 = sld [smem:[%s36]]
  %s38 = scalar_lea.smem %s0, 19
  %s39 = sld [smem:[%s38]]
  %s40 = scalar_lea.smem %s0, 20
  %s41 = sld [smem:[%s40]]
  %s42 = scalar_lea.smem %s0, 21
  %s43 = sld [smem:[%s42]]
  %s44 = scalar_lea.smem %s0, 22
  %s45 = sld [smem:[%s44]]
  %s46 = scalar_lea.smem %s0, 23
  %s47 = sld [smem:[%s46]]
  %s48 = scalar_lea.smem %s0, 24
  %s49 = sld [smem:[%s48]]
  %s50 = scalar_lea.smem %s0, 25
  %s51 = sld [smem:[%s50]]
  %s52 = scalar_lea.smem %s0, 26
  %s53 = sld [smem:[%s52]]
  %s54 = scalar_lea.smem %s0, 27
  %s55 = sld [smem:[%s54]]
  %s56 = scalar_lea.smem %s0, 28
  %s57 = sld [smem:[%s56]]
  %s58 = scalar_lea.smem %s0, 29
  %s59 = sld [smem:[%s58]]
  %s60 = scalar_lea.smem %s0, 30
  %s61 = sld [smem:[%s60]]
  %s62 = sld [smem:[#allocation0]]
  $region170: #{tpu_custom_call.1} parent=0
    _
  %s64 = ssub.s32 1, %s62
  %s65 = scalar_select 0, %s64, %s62
  $region1: #{tpu_custom_call.1} parent=0
    #allocation2 [shape = 'u8[32768]{0}', space=vmem, size = 0x8000, scoped, tag = 'input window, operand 1, single buffered']
    #allocation3 [shape = 's32[1]{0}', space=sflag, size = 0x4, scoped, tag = 'scoped memory for tpu_custom_call.1']
    #allocation4 [shape = 's32[1]{0}', space=sflag, size = 0x4, scoped, tag = 'scoped memory for tpu_custom_call.1']
    #allocation5 [shape = 'u8[32768]{0}', space=vmem, size = 0x8000, scoped, tag = 'input window, operand 2, single buffered']
    #allocation6 [shape = 's32[1]{0}', space=sflag, size = 0x4, scoped, tag = 'scoped memory for tpu_custom_call.1']
    #allocation7 [shape = 'u8[32768]{0}', space=vmem, size = 0x8000, scoped, tag = 'input window, operand 6, single buffered']
    #allocation8 [shape = 'u8[32768]{0}', space=vmem, size = 0x8000, scoped, tag = 'input window, operand 10, single buffered']
    #allocation9 [shape = 's32[1]{0}', space=sflag, size = 0x4, scoped, tag = 'scoped memory for tpu_custom_call.1']
    #allocation10 [shape = 'u8[32768]{0}', space=vmem, size = 0x8000, scoped, tag = 'input window, operand 11, single buffered']
    #allocation11 [shape = 'u8[32768]{0}', space=vmem, size = 0x8000, scoped, tag = 'input window, operand 16, single buffered']
    #allocation12 [shape = 's32[1]{0}', space=sflag, size = 0x4, scoped, tag = 'scoped memory for tpu_custom_call.1']
    #allocation13 [shape = 'u8[32768]{0}', space=vmem, size = 0x8000, scoped, tag = 'input window, operand 20, single buffered']
    #allocation14 [shape = 'u8[32768]{0}', space=vmem, size = 0x8000, scoped, tag = 'input window, operand 21, single buffered']
    #allocation15 [shape = 's32[1]{0}', space=sflag, size = 0x4, scoped, tag = 'scoped memory for tpu_custom_call.1']
    #allocation16 [shape = 'u8[32768]{0}', space=vmem, size = 0x8000, scoped, tag = 'input window, operand 25, single buffered']
    #allocation17 [shape = 'u8[32768]{0}', space=vmem, size = 0x8000, scoped, tag = 'input window, operand 26, single buffered']
    #allocation18 [shape = 's32[1]{0}', space=sflag, size = 0x4, scoped, tag = 'scoped memory for tpu_custom_call.1']
    #allocation19 [shape = 'u8[8192]{0}', space=vmem, size = 0x2000, scoped, tag = 'output window, operand 0, single buffered']
    %66 = vsyncpa [#allocation3], 0
    %67 = vsyncpa [#allocation6], 0
    %68 = vsyncpa [#allocation9], 0
    %69 = vsyncpa [#allocation12], 0
    %70 = vsyncpa [#allocation15], 0
    %71 = vsyncpa [#allocation18], 0
    %72 = vsyncpa [#allocation4], 0
    // Predicated region
    $region2: #{tpu_custom_call.1} parent=1 // pred_check
      _
    $region3: #{tpu_custom_call.1} parent=1 // pred_check_branch
      %74 = sbr.rel (0) target = $region5
    $region4: #{tpu_custom_call.1} parent=1 // pred_region
      _
    $region5: #{tpu_custom_call.1} parent=1 // pred_fallthru
      _
    // Predicated region
    $region6: #{tpu_custom_call.1} parent=1 // pred_check
      _
    $region7: #{tpu_custom_call.1} parent=1 // pred_check_branch
      %76 = sbr.rel (0) target = $region9
    $region8: #{tpu_custom_call.1} parent=1 // pred_region
      %s78 = ssub.s32 1024, 1024
      %79 = vsyncadd [#allocation3], %s78
      %s80 = sshll.u32 [#allocation2], 4
      %s81 = int_to_ptr.vmem [resolvable:$true] %s80
      %86 = dma.hbm_to_vmem [thread:$0]  %s3, 1024, %s81, [#allocation3], 64, 64, 4
    $region9: #{tpu_custom_call.1} parent=1 // pred_fallthru
      _
    // Predicated region
    $region10: #{tpu_custom_call.1} parent=1 // pred_check
      _
    $region11: #{tpu_custom_call.1} parent=1 // pred_check_branch
      %88 = sbr.rel (0) target = $region13
    $region12: #{tpu_custom_call.1} parent=1 // pred_region
      %s90 = ssub.s32 1024, 1024
      %91 = vsyncadd [#allocation6], %s90
      %s92 = sshll.u32 [#allocation5], 4
      %s93 = int_to_ptr.vmem [resolvable:$true] %s92
      %98 = dma.hbm_to_vmem [thread:$0]  %s5, 1024, %s93, [#allocation6], 64, 64, 4
    $region13: #{tpu_custom_call.1} parent=1 // pred_fallthru
      _
    // Predicated region
    $region14: #{tpu_custom_call.1} parent=1 // pred_check
      _
    $region15: #{tpu_custom_call.1} parent=1 // pred_check_branch
      %100 = sbr.rel (0) target = $region17
    $region16: #{tpu_custom_call.1} parent=1 // pred_region
      _
    $region17: #{tpu_custom_call.1} parent=1 // pred_fallthru
      _
    // Predicated region
    $region18: #{tpu_custom_call.1} parent=1 // pred_check
      _
    $region19: #{tpu_custom_call.1} parent=1 // pred_check_branch
      %102 = sbr.rel (0) target = $region21
    $region20: #{tpu_custom_call.1} parent=1 // pred_region
      _
    $region21: #{tpu_custom_call.1} parent=1 // pred_fallthru
      _
    // Predicated region
    $region22: #{tpu_custom_call.1} parent=1 // pred_check
      _
    $region23: #{tpu_custom_call.1} parent=1 // pred_check_branch
      %104 = sbr.rel (0) target = $region25
    $region24: #{tpu_custom_call.1} parent=1 // pred_region
      _
    $region25: #{tpu_custom_call.1} parent=1 // pred_fallthru
      _
    // Predicated region
    $region26: #{tpu_custom_call.1} parent=1 // pred_check
      _
    $region27: #{tpu_custom_call.1} parent=1 // pred_check_branch
      %106 = sbr.rel (0) target = $region29
    $region28: #{tpu_custom_call.1} parent=1 // pred_region
      %s108 = ssub.s32 1024, 1024
      %109 = vsyncadd [#allocation6], %s108
      %s110 = sshll.u32 [#allocation7], 4
      %s111 = int_to_ptr.vmem [resolvable:$true] %s110
      %116 = dma.hbm_to_vmem [thread:$0]  %s13, 1024, %s111, [#allocation6], 64, 64, 4
    $region29: #{tpu_custom_call.1} parent=1 // pred_fallthru
      _
    // Predicated region
    $region30: #{tpu_custom_call.1} parent=1 // pred_check
      _
    $region31: #{tpu_custom_call.1} parent=1 // pred_check_branch
      %118 = sbr.rel (0) target = $region33
    $region32: #{tpu_custom_call.1} parent=1 // pred_region
      _
    $region33: #{tpu_custom_call.1} parent=1 // pred_fallthru
      _
    // Predicated region
    $region34: #{tpu_custom_call.1} parent=1 // pred_check
      _
    $region35: #{tpu_custom_call.1} parent=1 // pred_check_branch
      %120 = sbr.rel (0) target = $region37
    $region36: #{tpu_custom_call.1} parent=1 // pred_region
      _
    $region37: #{tpu_custom_call.1} parent=1 // pred_fallthru
      _
    // Predicated region
    $region38: #{tpu_custom_call.1} parent=1 // pred_check
      _
    $region39: #{tpu_custom_call.1} parent=1 // pred_check_branch
      %122 = sbr.rel (0) target = $region41
    $region40: #{tpu_custom_call.1} parent=1 // pred_region
      _
    $region41: #{tpu_custom_call.1} parent=1 // pred_fallthru
      _
    // Predicated region
    $region42: #{tpu_custom_call.1} parent=1 // pred_check
      _
    $region43: #{tpu_custom_call.1} parent=1 // pred_check_branch
      %124 = sbr.rel (0) target = $region45
    $region44: #{tpu_custom_call.1} parent=1 // pred_region
      %s126 = ssub.s32 1024, 1024
      %127 = vsyncadd [#allocation9], %s126
      %s128 = sshll.u32 [#allocation8], 4
      %s129 = int_to_ptr.vmem [resolvable:$true] %s128
      %134 = dma.hbm_to_vmem [thread:$0]  %s21, 1024, %s129, [#allocation9], 64, 64, 4
    $region45: #{tpu_custom_call.1} parent=1 // pred_fallthru
      _
    // Predicated region
    $region46: #{tpu_custom_call.1} parent=1 // pred_check
      _
    $region47: #{tpu_custom_call.1} parent=1 // pred_check_branch
      %136 = sbr.rel (0) target = $region49
    $region48: #{tpu_custom_call.1} parent=1 // pred_region
      %s138 = ssub.s32 1024, 1024
      %139 = vsyncadd [#allocation9], %s138
      %s140 = sshll.u32 [#allocation10], 4
      %s141 = int_to_ptr.vmem [resolvable:$true] %s140
      %146 = dma.hbm_to_vmem [thread:$0]  %s23, 1024, %s141, [#allocation9], 64, 64, 4
    $region49: #{tpu_custom_call.1} parent=1 // pred_fallthru
      _
    // Predicated region
    $region50: #{tpu_custom_call.1} parent=1 // pred_check
      _
    $region51: #{tpu_custom_call.1} parent=1 // pred_check_branch
      %148 = sbr.rel (0) target = $region53
    $region52: #{tpu_custom_call.1} parent=1 // pred_region
      _
    $region53: #{tpu_custom_call.1} parent=1 // pred_fallthru
      _
    // Predicated region
    $region54: #{tpu_custom_call.1} parent=1 // pred_check
      _
    $region55: #{tpu_custom_call.1} parent=1 // pred_check_branch
      %150 = sbr.rel (0) target = $region57
    $region56: #{tpu_custom_call.1} parent=1 // pred_region
      _
    $region57: #{tpu_custom_call.1} parent=1 // pred_fallthru
      _
    // Predicated region
    $region58: #{tpu_custom_call.1} parent=1 // pred_check
      _
    $region59: #{tpu_custom_call.1} parent=1 // pred_check_branch
      %152 = sbr.rel (0) target = $region61
    $region60: #{tpu_custom_call.1} parent=1 // pred_region
      _
    $region61: #{tpu_custom_call.1} parent=1 // pred_fallthru
      _
    // Predicated region
    $region62: #{tpu_custom_call.1} parent=1 // pred_check
      _
    $region63: #{tpu_custom_call.1} parent=1 // pred_check_branch
      %154 = sbr.rel (0) target = $region65
    $region64: #{tpu_custom_call.1} parent=1 // pred_region
      _
    $region65: #{tpu_custom_call.1} parent=1 // pred_fallthru
      _
    // Predicated region
    $region66: #{tpu_custom_call.1} parent=1 // pred_check
      _
    $region67: #{tpu_custom_call.1} parent=1 // pred_check_branch
      %156 = sbr.rel (0) target = $region69
    $region68: #{tpu_custom_call.1} parent=1 // pred_region
      %s158 = ssub.s32 1024, 1024
      %159 = vsyncadd [#allocation12], %s158
      %s160 = sshll.u32 [#allocation11], 4
      %s161 = int_to_ptr.vmem [resolvable:$true] %s160
      %166 = dma.hbm_to_vmem [thread:$0]  %s33, 1024, %s161, [#allocation12], 64, 64, 4
    $region69: #{tpu_custom_call.1} parent=1 // pred_fallthru
      _
    // Predicated region
    $region70: #{tpu_custom_call.1} parent=1 // pred_check
      _
    $region71: #{tpu_custom_call.1} parent=1 // pred_check_branch
      %168 = sbr.rel (0) target = $region73
    $region72: #{tpu_custom_call.1} parent=1 // pred_region
      _
    $region73: #{tpu_custom_call.1} parent=1 // pred_fallthru
      _
    // Predicated region
    $region74: #{tpu_custom_call.1} parent=1 // pred_check
      _
    $region75: #{tpu_custom_call.1} parent=1 // pred_check_branch
      %170 = sbr.rel (0) target = $region77
    $region76: #{tpu_custom_call.1} parent=1 // pred_region
      _
    $region77: #{tpu_custom_call.1} parent=1 // pred_fallthru
      _
    // Predicated region
    $region78: #{tpu_custom_call.1} parent=1 // pred_check
      _
    $region79: #{tpu_custom_call.1} parent=1 // pred_check_branch
      %172 = sbr.rel (0) target = $region81
    $region80: #{tpu_custom_call.1} parent=1 // pred_region
      _
    $region81: #{tpu_custom_call.1} parent=1 // pred_fallthru
      _
    // Predicated region
    $region82: #{tpu_custom_call.1} parent=1 // pred_check
      _
    $region83: #{tpu_custom_call.1} parent=1 // pred_check_branch
      %174 = sbr.rel (0) target = $region85
    $region84: #{tpu_custom_call.1} parent=1 // pred_region
      %s176 = ssub.s32 1024, 1024
      %177 = vsyncadd [#allocation12], %s176
      %s178 = sshll.u32 [#allocation13], 4
      %s179 = int_to_ptr.vmem [resolvable:$true] %s178
      %184 = dma.hbm_to_vmem [thread:$0]  %s41, 1024, %s179, [#allocation12], 64, 64, 4
    $region85: #{tpu_custom_call.1} parent=1 // pred_fallthru
      _
    // Predicated region
    $region86: #{tpu_custom_call.1} parent=1 // pred_check
      _
    $region87: #{tpu_custom_call.1} parent=1 // pred_check_branch
      %186 = sbr.rel (0) target = $region89
    $region88: #{tpu_custom_call.1} parent=1 // pred_region
      %s188 = ssub.s32 1024, 1024
      %189 = vsyncadd [#allocation15], %s188
      %s190 = sshll.u32 [#allocation14], 4
      %s191 = int_to_ptr.vmem [resolvable:$true] %s190
      %196 = dma.hbm_to_vmem [thread:$0]  %s43, 1024, %s191, [#allocation15], 64, 64, 4
    $region89: #{tpu_custom_call.1} parent=1 // pred_fallthru
      _
    // Predicated region
    $region90: #{tpu_custom_call.1} parent=1 // pred_check
      _
    $region91: #{tpu_custom_call.1} parent=1 // pred_check_branch
      %198 = sbr.rel (0) target = $region93
    $region92: #{tpu_custom_call.1} parent=1 // pred_region
      _
    $region93: #{tpu_custom_call.1} parent=1 // pred_fallthru
      _
    // Predicated region
    $region94: #{tpu_custom_call.1} parent=1 // pred_check
      _
    $region95: #{tpu_custom_call.1} parent=1 // pred_check_branch
      %200 = sbr.rel (0) target = $region97
    $region96: #{tpu_custom_call.1} parent=1 // pred_region
      _
    $region97: #{tpu_custom_call.1} parent=1 // pred_fallthru
      _
    // Predicated region
    $region98: #{tpu_custom_call.1} parent=1 // pred_check
      _
    $region99: #{tpu_custom_call.1} parent=1 // pred_check_branch
      %202 = sbr.rel (0) target = $region101
    $region100: #{tpu_custom_call.1} parent=1 // pred_region
      _
    $region101: #{tpu_custom_call.1} parent=1 // pred_fallthru
      _
    // Predicated region
    $region102: #{tpu_custom_call.1} parent=1 // pred_check
      _
    $region103: #{tpu_custom_call.1} parent=1 // pred_check_branch
      %204 = sbr.rel (0) target = $region105
    $region104: #{tpu_custom_call.1} parent=1 // pred_region
      %s206 = ssub.s32 1024, 1024
      %207 = vsyncadd [#allocation15], %s206
      %s208 = sshll.u32 [#allocation16], 4
      %s209 = int_to_ptr.vmem [resolvable:$true] %s208
      %214 = dma.hbm_to_vmem [thread:$0]  %s51, 1024, %s209, [#allocation15], 64, 64, 4
    $region105: #{tpu_custom_call.1} parent=1 // pred_fallthru
      _
    // Predicated region
    $region106: #{tpu_custom_call.1} parent=1 // pred_check
      _
    $region107: #{tpu_custom_call.1} parent=1 // pred_check_branch
      %216 = sbr.rel (0) target = $region109
    $region108: #{tpu_custom_call.1} parent=1 // pred_region
      %s218 = ssub.s32 1024, 1024
      %219 = vsyncadd [#allocation18], %s218
      %s220 = sshll.u32 [#allocation17], 4
      %s221 = int_to_ptr.vmem [resolvable:$true] %s220
      %226 = dma.hbm_to_vmem [thread:$0]  %s53, 1024, %s221, [#allocation18], 64, 64, 4
    $region109: #{tpu_custom_call.1} parent=1 // pred_fallthru
      _
    // Predicated region
    $region110: #{tpu_custom_call.1} parent=1 // pred_check
      _
    $region111: #{tpu_custom_call.1} parent=1 // pred_check_branch
      %228 = sbr.rel (0) target = $region113
    $region112: #{tpu_custom_call.1} parent=1 // pred_region
      _
    $region113: #{tpu_custom_call.1} parent=1 // pred_fallthru
      _
    // Predicated region
    $region114: #{tpu_custom_call.1} parent=1 // pred_check
      _
    $region115: #{tpu_custom_call.1} parent=1 // pred_check_branch
      %230 = sbr.rel (0) target = $region117
    $region116: #{tpu_custom_call.1} parent=1 // pred_region
      _
    $region117: #{tpu_custom_call.1} parent=1 // pred_fallthru
      _
    // Predicated region
    $region118: #{tpu_custom_call.1} parent=1 // pred_check
      _
    $region119: #{tpu_custom_call.1} parent=1 // pred_check_branch
      %232 = sbr.rel (0) target = $region121
    $region120: #{tpu_custom_call.1} parent=1 // pred_region
      _
    $region121: #{tpu_custom_call.1} parent=1 // pred_fallthru
      _
    // Predicated region
    $region122: #{tpu_custom_call.1} parent=1 // pred_check
      _
    $region123: #{tpu_custom_call.1} parent=1 // pred_check_branch
      %234 = sbr.rel (0) target = $region125
    $region124: #{tpu_custom_call.1} parent=1 // pred_region
      %235 = dma.done [#allocation3], 1024
    $region125: #{tpu_custom_call.1} parent=1 // pred_fallthru
      _
    // Predicated region
    $region126: #{tpu_custom_call.1} parent=1 // pred_check
      _
    $region127: #{tpu_custom_call.1} parent=1 // pred_check_branch
      %237 = sbr.rel (0) target = $region129
    $region128: #{tpu_custom_call.1} parent=1 // pred_region
      %238 = dma.done [#allocation6], 1024
    $region129: #{tpu_custom_call.1} parent=1 // pred_fallthru
      _
    // Predicated region
    $region130: #{tpu_custom_call.1} parent=1 // pred_check
      _
    $region131: #{tpu_custom_call.1} parent=1 // pred_check_branch
      %240 = sbr.rel (0) target = $region133
    $region132: #{tpu_custom_call.1} parent=1 // pred_region
      %241 = dma.done [#allocation6], 1024
    $region133: #{tpu_custom_call.1} parent=1 // pred_fallthru
      _
    // Predicated region
    $region134: #{tpu_custom_call.1} parent=1 // pred_check
      _
    $region135: #{tpu_custom_call.1} parent=1 // pred_check_branch
      %243 = sbr.rel (0) target = $region137
    $region136: #{tpu_custom_call.1} parent=1 // pred_region
      %244 = dma.done [#allocation9], 1024
    $region137: #{tpu_custom_call.1} parent=1 // pred_fallthru
      _
    // Predicated region
    $region138: #{tpu_custom_call.1} parent=1 // pred_check
      _
    $region139: #{tpu_custom_call.1} parent=1 // pred_check_branch
      %246 = sbr.rel (0) target = $region141
    $region140: #{tpu_custom_call.1} parent=1 // pred_region
      %247 = dma.done [#allocation9], 1024
    $region141: #{tpu_custom_call.1} parent=1 // pred_fallthru
      _
    // Predicated region
    $region142: #{tpu_custom_call.1} parent=1 // pred_check
      _
    $region143: #{tpu_custom_call.1} parent=1 // pred_check_branch
      %249 = sbr.rel (0) target = $region145
    $region144: #{tpu_custom_call.1} parent=1 // pred_region
      %250 = dma.done [#allocation12], 1024
    $region145: #{tpu_custom_call.1} parent=1 // pred_fallthru
      _
    // Predicated region
    $region146: #{tpu_custom_call.1} parent=1 // pred_check
      _
    $region147: #{tpu_custom_call.1} parent=1 // pred_check_branch
      %252 = sbr.rel (0) target = $region149
    $region148: #{tpu_custom_call.1} parent=1 // pred_region
      %253 = dma.done [#allocation12], 1024
    $region149: #{tpu_custom_call.1} parent=1 // pred_fallthru
      _
    // Predicated region
    $region150: #{tpu_custom_call.1} parent=1 // pred_check
      _
    $region151: #{tpu_custom_call.1} parent=1 // pred_check_branch
      %255 = sbr.rel (0) target = $region153
    $region152: #{tpu_custom_call.1} parent=1 // pred_region
      %256 = dma.done [#allocation15], 1024
    $region153: #{tpu_custom_call.1} parent=1 // pred_fallthru
      _
    // Predicated region
    $region154: #{tpu_custom_call.1} parent=1 // pred_check
      _
    $region155: #{tpu_custom_call.1} parent=1 // pred_check_branch
      %258 = sbr.rel (0) target = $region157
    $region156: #{tpu_custom_call.1} parent=1 // pred_region
      %259 = dma.done [#allocation15], 1024
    $region157: #{tpu_custom_call.1} parent=1 // pred_fallthru
      _
    // Predicated region
    $region158: #{tpu_custom_call.1} parent=1 // pred_check
      _
    $region159: #{tpu_custom_call.1} parent=1 // pred_check_branch
      %261 = sbr.rel (0) target = $region161
    $region160: #{tpu_custom_call.1} parent=1 // pred_region
      %262 = dma.done [#allocation18], 1024
    $region161: #{tpu_custom_call.1} parent=1 // pred_fallthru
      _
    %v264 = vld [vmem:[#allocation5] sm:$0xf]
    %v265 = vld [vmem:[#allocation5 + $0x4] sm:$0xf]
    %v266 = vld [vmem:[#allocation5 + $0x8] sm:$0xf]
    %v267 = vld [vmem:[#allocation5 + $0xc] sm:$0xf]
    %v268 = vld [vmem:[#allocation5 + $0x10] sm:$0xf]
    %v269 = vld [vmem:[#allocation5 + $0x14] sm:$0xf]
    %v270 = vld [vmem:[#allocation5 + $0x18] sm:$0xf]
    %v271 = vld [vmem:[#allocation5 + $0x1c] sm:$0xf]
    %v272 = vld [vmem:[#allocation5 + $0x20] sm:$0xf]
    %v273 = vld [vmem:[#allocation5 + $0x24] sm:$0xf]
    %v274 = vld [vmem:[#allocation5 + $0x28] sm:$0xf]
    %v275 = vld [vmem:[#allocation5 + $0x2c] sm:$0xf]
    %v276 = vld [vmem:[#allocation5 + $0x30] sm:$0xf]
    %v277 = vld [vmem:[#allocation5 + $0x34] sm:$0xf]
    %v278 = vld [vmem:[#allocation5 + $0x38] sm:$0xf]
    %v279 = vld [vmem:[#allocation5 + $0x3c] sm:$0xf]
    %v280 = vld [vmem:[%s7] sm:$0x1]
    %v281 = vld [vmem:[%s9] sm:$0x1]
    %v282 = vld [vmem:[%s11] sm:$0x1]
    %v283 = vld [vmem:[#allocation7] sm:$0xf]
    %v284 = vld [vmem:[#allocation7 + $0x4] sm:$0xf]
    %v285 = vld [vmem:[#allocation7 + $0x8] sm:$0xf]
    %v286 = vld [vmem:[#allocation7 + $0xc] sm:$0xf]
    %v287 = vld [vmem:[#allocation7 + $0x10] sm:$0xf]
    %v288 = vld [vmem:[#allocation7 + $0x14] sm:$0xf]
    %v289 = vld [vmem:[#allocation7 + $0x18] sm:$0xf]
    %v290 = vld [vmem:[#allocation7 + $0x1c] sm:$0xf]
    %v291 = vld [vmem:[#allocation7 + $0x20] sm:$0xf]
    %v292 = vld [vmem:[#allocation7 + $0x24] sm:$0xf]
    %v293 = vld [vmem:[#allocation7 + $0x28] sm:$0xf]
    %v294 = vld [vmem:[#allocation7 + $0x2c] sm:$0xf]
    %v295 = vld [vmem:[#allocation7 + $0x30] sm:$0xf]
    %v296 = vld [vmem:[#allocation7 + $0x34] sm:$0xf]
    %v297 = vld [vmem:[#allocation7 + $0x38] sm:$0xf]
    %v298 = vld [vmem:[#allocation7 + $0x3c] sm:$0xf]
    %v299 = vld [vmem:[%s15] sm:$0x1]
    %v300 = vld [vmem:[%s17] sm:$0x1]
    %v301 = vld [vmem:[%s19] sm:$0x1]
    %v302 = vld [vmem:[#allocation8] sm:$0xf]
    %v303 = vld [vmem:[#allocation8 + $0x4] sm:$0xf]
    %v304 = vld [vmem:[#allocation8 + $0x8] sm:$0xf]
    %v305 = vld [vmem:[#allocation8 + $0xc] sm:$0xf]
    %v306 = vld [vmem:[#allocation8 + $0x10] sm:$0xf]
    %v307 = vld [vmem:[#allocation8 + $0x14] sm:$0xf]
    %v308 = vld [vmem:[#allocation8 + $0x18] sm:$0xf]
    %v309 = vld [vmem:[#allocation8 + $0x1c] sm:$0xf]
    %v310 = vld [vmem:[#allocation8 + $0x20] sm:$0xf]
    %v311 = vld [vmem:[#allocation8 + $0x24] sm:$0xf]
    %v312 = vld [vmem:[#allocation8 + $0x28] sm:$0xf]
    %v313 = vld [vmem:[#allocation8 + $0x2c] sm:$0xf]
    %v314 = vld [vmem:[#allocation8 + $0x30] sm:$0xf]
    %v315 = vld [vmem:[#allocation8 + $0x34] sm:$0xf]
    %v316 = vld [vmem:[#allocation8 + $0x38] sm:$0xf]
    %v317 = vld [vmem:[#allocation8 + $0x3c] sm:$0xf]
    %v318 = vld [vmem:[#allocation10] sm:$0xf]
    %v319 = vld [vmem:[#allocation10 + $0x4] sm:$0xf]
    %v320 = vld [vmem:[#allocation10 + $0x8] sm:$0xf]
    %v321 = vld [vmem:[#allocation10 + $0xc] sm:$0xf]
    %v322 = vld [vmem:[#allocation10 + $0x10] sm:$0xf]
    %v323 = vld [vmem:[#allocation10 + $0x14] sm:$0xf]
    %v324 = vld [vmem:[#allocation10 + $0x18] sm:$0xf]
    %v325 = vld [vmem:[#allocation10 + $0x1c] sm:$0xf]
    %v326 = vld [vmem:[#allocation10 + $0x20] sm:$0xf]
    %v327 = vld [vmem:[#allocation10 + $0x24] sm:$0xf]
    %v328 = vld [vmem:[#allocation10 + $0x28] sm:$0xf]
    %v329 = vld [vmem:[#allocation10 + $0x2c] sm:$0xf]
    %v330 = vld [vmem:[#allocation10 + $0x30] sm:$0xf]
    %v331 = vld [vmem:[#allocation10 + $0x34] sm:$0xf]
    %v332 = vld [vmem:[#allocation10 + $0x38] sm:$0xf]
    %v333 = vld [vmem:[#allocation10 + $0x3c] sm:$0xf]
    %v334 = vld [vmem:[%s25] sm:$0x1]
    %v335 = vld [vmem:[%s27] sm:$0x1]
    %v336 = vld [vmem:[%s29] sm:$0x1]
    %v337 = vld [vmem:[%s31] sm:$0xf]
    %v338 = vld [vmem:[%s31 + $0x4] sm:$0xf]
    %v339 = vld [vmem:[%s31 + $0x8] sm:$0xf]
    %v340 = vld [vmem:[%s31 + $0xc] sm:$0xf]
    %v341 = vld [vmem:[%s31 + $0x10] sm:$0xf]
    %v342 = vld [vmem:[%s31 + $0x14] sm:$0xf]
    %v343 = vld [vmem:[%s31 + $0x18] sm:$0xf]
    %v344 = vld [vmem:[%s31 + $0x1c] sm:$0xf]
    %v345 = vld [vmem:[%s31 + $0x20] sm:$0xf]
    %v346 = vld [vmem:[%s31 + $0x24] sm:$0xf]
    %v347 = vld [vmem:[%s31 + $0x28] sm:$0xf]
    %v348 = vld [vmem:[%s31 + $0x2c] sm:$0xf]
    %v349 = vld [vmem:[%s31 + $0x30] sm:$0xf]
    %v350 = vld [vmem:[%s31 + $0x34] sm:$0xf]
    %v351 = vld [vmem:[%s31 + $0x38] sm:$0xf]
    %v352 = vld [vmem:[%s31 + $0x3c] sm:$0xf]
    %v353 = vld [vmem:[#allocation11] sm:$0xf]
    %v354 = vld [vmem:[#allocation11 + $0x4] sm:$0xf]
    %v355 = vld [vmem:[#allocation11 + $0x8] sm:$0xf]
    %v356 = vld [vmem:[#allocation11 + $0xc] sm:$0xf]
    %v357 = vld [vmem:[#allocation11 + $0x10] sm:$0xf]
    %v358 = vld [vmem:[#allocation11 + $0x14] sm:$0xf]
    %v359 = vld [vmem:[#allocation11 + $0x18] sm:$0xf]
    %v360 = vld [vmem:[#allocation11 + $0x1c] sm:$0xf]
    %v361 = vld [vmem:[#allocation11 + $0x20] sm:$0xf]
    %v362 = vld [vmem:[#allocation11 + $0x24] sm:$0xf]
    %v363 = vld [vmem:[#allocation11 + $0x28] sm:$0xf]
    %v364 = vld [vmem:[#allocation11 + $0x2c] sm:$0xf]
    %v365 = vld [vmem:[#allocation11 + $0x30] sm:$0xf]
    %v366 = vld [vmem:[#allocation11 + $0x34] sm:$0xf]
    %v367 = vld [vmem:[#allocation11 + $0x38] sm:$0xf]
    %v368 = vld [vmem:[#allocation11 + $0x3c] sm:$0xf]
    %v369 = vld [vmem:[%s35] sm:$0x1]
    %v370 = vld [vmem:[%s37] sm:$0x1]
    %v371 = vld [vmem:[%s39] sm:$0x1]
    %v372 = vld [vmem:[#allocation13] sm:$0xf]
    %v373 = vld [vmem:[#allocation13 + $0x4] sm:$0xf]
    %v374 = vld [vmem:[#allocation13 + $0x8] sm:$0xf]
    %v375 = vld [vmem:[#allocation13 + $0xc] sm:$0xf]
    %v376 = vld [vmem:[#allocation13 + $0x10] sm:$0xf]
    %v377 = vld [vmem:[#allocation13 + $0x14] sm:$0xf]
    %v378 = vld [vmem:[#allocation13 + $0x18] sm:$0xf]
    %v379 = vld [vmem:[#allocation13 + $0x1c] sm:$0xf]
    %v380 = vld [vmem:[#allocation13 + $0x20] sm:$0xf]
    %v381 = vld [vmem:[#allocation13 + $0x24] sm:$0xf]
    %v382 = vld [vmem:[#allocation13 + $0x28] sm:$0xf]
    %v383 = vld [vmem:[#allocation13 + $0x2c] sm:$0xf]
    %v384 = vld [vmem:[#allocation13 + $0x30] sm:$0xf]
    %v385 = vld [vmem:[#allocation13 + $0x34] sm:$0xf]
    %v386 = vld [vmem:[#allocation13 + $0x38] sm:$0xf]
    %v387 = vld [vmem:[#allocation13 + $0x3c] sm:$0xf]
    %v388 = vld [vmem:[#allocation14] sm:$0xf]
    %v389 = vld [vmem:[#allocation14 + $0x4] sm:$0xf]
    %v390 = vld [vmem:[#allocation14 + $0x8] sm:$0xf]
    %v391 = vld [vmem:[#allocation14 + $0xc] sm:$0xf]
    %v392 = vld [vmem:[#allocation14 + $0x10] sm:$0xf]
    %v393 = vld [vmem:[#allocation14 + $0x14] sm:$0xf]
    %v394 = vld [vmem:[#allocation14 + $0x18] sm:$0xf]
    %v395 = vld [vmem:[#allocation14 + $0x1c] sm:$0xf]
    %v396 = vld [vmem:[#allocation14 + $0x20] sm:$0xf]
    %v397 = vld [vmem:[#allocation14 + $0x24] sm:$0xf]
    %v398 = vld [vmem:[#allocation14 + $0x28] sm:$0xf]
    %v399 = vld [vmem:[#allocation14 + $0x2c] sm:$0xf]
    %v400 = vld [vmem:[#allocation14 + $0x30] sm:$0xf]
    %v401 = vld [vmem:[#allocation14 + $0x34] sm:$0xf]
    %v402 = vld [vmem:[#allocation14 + $0x38] sm:$0xf]
    %v403 = vld [vmem:[#allocation14 + $0x3c] sm:$0xf]
    %v404 = vld [vmem:[%s45] sm:$0x1]
    %v405 = vld [vmem:[%s47] sm:$0x1]
    %v406 = vld [vmem:[%s49] sm:$0x1]
    %v407 = vld [vmem:[#allocation16] sm:$0xf]
    %v408 = vld [vmem:[#allocation16 + $0x4] sm:$0xf]
    %v409 = vld [vmem:[#allocation16 + $0x8] sm:$0xf]
    %v410 = vld [vmem:[#allocation16 + $0xc] sm:$0xf]
    %v411 = vld [vmem:[#allocation16 + $0x10] sm:$0xf]
    %v412 = vld [vmem:[#allocation16 + $0x14] sm:$0xf]
    %v413 = vld [vmem:[#allocation16 + $0x18] sm:$0xf]
    %v414 = vld [vmem:[#allocation16 + $0x1c] sm:$0xf]
    %v415 = vld [vmem:[#allocation16 + $0x20] sm:$0xf]
    %v416 = vld [vmem:[#allocation16 + $0x24] sm:$0xf]
    %v417 = vld [vmem:[#allocation16 + $0x28] sm:$0xf]
    %v418 = vld [vmem:[#allocation16 + $0x2c] sm:$0xf]
    %v419 = vld [vmem:[#allocation16 + $0x30] sm:$0xf]
    %v420 = vld [vmem:[#allocation16 + $0x34] sm:$0xf]
    %v421 = vld [vmem:[#allocation16 + $0x38] sm:$0xf]
    %v422 = vld [vmem:[#allocation16 + $0x3c] sm:$0xf]
    %v423 = vld [vmem:[#allocation17] sm:$0xf]
    %v424 = vld [vmem:[#allocation17 + $0x4] sm:$0xf]
    %v425 = vld [vmem:[#allocation17 + $0x8] sm:$0xf]
    %v426 = vld [vmem:[#allocation17 + $0xc] sm:$0xf]
    %v427 = vld [vmem:[#allocation17 + $0x10] sm:$0xf]
    %v428 = vld [vmem:[#allocation17 + $0x14] sm:$0xf]
    %v429 = vld [vmem:[#allocation17 + $0x18] sm:$0xf]
    %v430 = vld [vmem:[#allocation17 + $0x1c] sm:$0xf]
    %v431 = vld [vmem:[#allocation17 + $0x20] sm:$0xf]
    %v432 = vld [vmem:[#allocation17 + $0x24] sm:$0xf]
    %v433 = vld [vmem:[#allocation17 + $0x28] sm:$0xf]
    %v434 = vld [vmem:[#allocation17 + $0x2c] sm:$0xf]
    %v435 = vld [vmem:[#allocation17 + $0x30] sm:$0xf]
    %v436 = vld [vmem:[#allocation17 + $0x34] sm:$0xf]
    %v437 = vld [vmem:[#allocation17 + $0x38] sm:$0xf]
    %v438 = vld [vmem:[#allocation17 + $0x3c] sm:$0xf]
    %v439 = vld [vmem:[%s55] sm:$0x1]
    %v440 = vld [vmem:[%s57] sm:$0x1]
    %v441 = vld [vmem:[%s59] sm:$0x1]
    %v442 = vld [vmem:[%s1] sm:$0xff]
    %v443 = vld [vmem:[%s1 + $0x8] sm:$0xff]
    %v444 = vlaneseq
    %v445 = vand.u32 %v444, 127
    %446 = vset.pattern.permute.xlu0 0
    %447 = vperm.xlu0 %446, %v442
    %v448 = vpop.permute.xlu0 %447
    %449 = vset.pattern.permute.xlu0 0
    %450 = vperm.xlu0 %449, %v443
    %v451 = vpop.permute.xlu0 %450
    %vm452 = vcmp.eq.s32.totalorder %v448, %v445
    %vm453 = vcmp.eq.s32.totalorder %v451, %v445
    %v454 = vsel %vm452, 1, 0
    %v455 = vsel %vm453, 1, 0
    %v456 = vcvt.s32.f32 %v454
    %v457 = vcvt.s32.f32 %v455
    %v458 = vpack.c.bf16 %v457, %v456
    %v459 = vld [vmem:[#allocation2] sm:$0xf]
    %v460 = vld [vmem:[#allocation2 + $0x4] sm:$0xf]
    %v461 = vld [vmem:[#allocation2 + $0x8] sm:$0xf]
    %v462 = vld [vmem:[#allocation2 + $0xc] sm:$0xf]
    %v463 = vld [vmem:[#allocation2 + $0x10] sm:$0xf]
    %v464 = vld [vmem:[#allocation2 + $0x14] sm:$0xf]
    %v465 = vld [vmem:[#allocation2 + $0x18] sm:$0xf]
    %v466 = vld [vmem:[#allocation2 + $0x1c] sm:$0xf]
    %v467 = vld [vmem:[#allocation2 + $0x20] sm:$0xf]
    %v468 = vld [vmem:[#allocation2 + $0x24] sm:$0xf]
    %v469 = vld [vmem:[#allocation2 + $0x28] sm:$0xf]
    %v470 = vld [vmem:[#allocation2 + $0x2c] sm:$0xf]
    %v471 = vld [vmem:[#allocation2 + $0x30] sm:$0xf]
    %v472 = vld [vmem:[#allocation2 + $0x34] sm:$0xf]
    %v473 = vld [vmem:[#allocation2 + $0x38] sm:$0xf]
    %v474 = vld [vmem:[#allocation2 + $0x3c] sm:$0xf]
    %v491 = vunpack.c.l.b16 %v459
    %v492 = vunpack.c.l.b16 %v460
    %v493 = vunpack.c.l.b16 %v461
    %v494 = vunpack.c.l.b16 %v462
    %v495 = vunpack.c.l.b16 %v463
    %v496 = vunpack.c.l.b16 %v464
    %v497 = vunpack.c.l.b16 %v465
    %v498 = vunpack.c.l.b16 %v466
    %v499 = vunpack.c.l.b16 %v467
    %v500 = vunpack.c.l.b16 %v468
    %v501 = vunpack.c.l.b16 %v469
    %v502 = vunpack.c.l.b16 %v470
    %v503 = vunpack.c.l.b16 %v471
    %v504 = vunpack.c.l.b16 %v472
    %v505 = vunpack.c.l.b16 %v473
    %v506 = vunpack.c.l.b16 %v474
    %v507 = vpack.c.b16 %v492, %v491
    %v508 = vpack.c.b16 %v494, %v493
    %v509 = vpack.c.b16 %v496, %v495
    %v510 = vpack.c.b16 %v498, %v497
    %v511 = vpack.c.b16 %v500, %v499
    %v512 = vpack.c.b16 %v502, %v501
    %v513 = vpack.c.b16 %v504, %v503
    %v514 = vpack.c.b16 %v506, %v505
    %523 = vmatprep.subr.bf16.mxu0 0
    %524 = vmatpush1.bf16.msra.mxu0 %v507
    %525 = vmatprep.subr.bf16.mxu0 0
    %526 = vmatpush1.bf16.msra.mxu0 %v508
    %527 = vmatprep.subr.bf16.mxu0 0
    %528 = vmatpush1.bf16.msra.mxu0 %v509
    %529 = vmatprep.subr.bf16.mxu0 0
    %530 = vmatpush1.bf16.msra.mxu0 %v510
    %531 = vmatprep.subr.bf16.mxu0 0
    %532 = vmatpush1.bf16.msra.mxu0 %v511
    %533 = vmatprep.subr.bf16.mxu0 0
    %534 = vmatpush1.bf16.msra.mxu0 %v512
    %535 = vmatprep.subr.bf16.mxu0 0
    %536 = vmatpush1.bf16.msra.mxu0 %v513
    %537 = vmatprep.subr.bf16.mxu0 0
    %538 = vmatpush1.bf16.msra.mxu0 %v514
    %539 = vmatprep.subr.bf16.mxu0 0
    %540 = vmatpush1.bf16.msra.mxu0 0
    %541 = vmatprep.subr.bf16.mxu0 0
    %542 = vmatpush1.bf16.msra.mxu0 0
    %543 = vmatprep.subr.bf16.mxu0 0
    %544 = vmatpush1.bf16.msra.mxu0 0
    %545 = vmatprep.subr.bf16.mxu0 0
    %546 = vmatpush1.bf16.msra.mxu0 0
    %547 = vmatprep.subr.bf16.mxu0 0
    %548 = vmatpush1.bf16.msra.mxu0 0
    %549 = vmatprep.subr.bf16.mxu0 0
    %550 = vmatpush1.bf16.msra.mxu0 0
    %551 = vmatprep.subr.bf16.mxu0 0
    %552 = vmatpush1.bf16.msra.mxu0 0
    %553 = vmatprep.subr.bf16.mxu0 0
    %554 = vmatpush1.bf16.msra.mxu0 0
    %555 = vmatprep.mubr.bf16.mxu0 0
    %556 = vmatmul.mubr.bf16.gmra.mrb[0].mxu0 %v458
    %v557 = vpop.f32.mrb[0].mxu0
    %v558 = vadd.f32 0.0, %v557
    %v559 = vpop.f32.mrb[0].mxu0
    %v560 = vpop.f32.mrb[0].mxu0
    %v561 = vadd.f32 0.0, %v560
    %v562 = vpop.f32.mrb[0].mxu0
    %563 = vdwg.mxu0
    %v564 = vpack.c.bf16 %v561, %v558
    %v566 = vlaneseq
    %v567 = vshrl.u32 %v566, 7
    %v568 = vsub.s32 0, %v567
    %v569 = vrot.slane %v280, %v568
    %v587 = vunpack.c.l.b16 %v264
    %v588 = vunpack.c.l.b16 %v265
    %v589 = vunpack.c.l.b16 %v266
    %v590 = vunpack.c.l.b16 %v267
    %v591 = vunpack.c.l.b16 %v268
    %v592 = vunpack.c.l.b16 %v269
    %v593 = vunpack.c.l.b16 %v270
    %v594 = vunpack.c.l.b16 %v271
    %v595 = vunpack.c.l.b16 %v272
    %v596 = vunpack.c.l.b16 %v273
    %v597 = vunpack.c.l.b16 %v274
    %v598 = vunpack.c.l.b16 %v275
    %v599 = vunpack.c.l.b16 %v276
    %v600 = vunpack.c.l.b16 %v277
    %v601 = vunpack.c.l.b16 %v278
    %v602 = vunpack.c.l.b16 %v279
    %v603 = vpack.c.b16 %v588, %v587
    %v604 = vpack.c.b16 %v590, %v589
    %v605 = vpack.c.b16 %v592, %v591
    %v606 = vpack.c.b16 %v594, %v593
    %v607 = vpack.c.b16 %v596, %v595
    %v608 = vpack.c.b16 %v598, %v597
    %v609 = vpack.c.b16 %v600, %v599
    %v610 = vpack.c.b16 %v602, %v601
    %619 = vmatprep.subr.bf16.mxu0 0
    %620 = vmatpush1.bf16.msra.mxu0 %v603
    %621 = vmatprep.subr.bf16.mxu0 0
    %622 = vmatpush1.bf16.msra.mxu0 %v604
    %623 = vmatprep.subr.bf16.mxu0 0
    %624 = vmatpush1.bf16.msra.mxu0 %v605
    %625 = vmatprep.subr.bf16.mxu0 0
    %626 = vmatpush1.bf16.msra.mxu0 %v606
    %627 = vmatprep.subr.bf16.mxu0 0
    %628 = vmatpush1.bf16.msra.mxu0 %v607
    %629 = vmatprep.subr.bf16.mxu0 0
    %630 = vmatpush1.bf16.msra.mxu0 %v608
    %631 = vmatprep.subr.bf16.mxu0 0
    %632 = vmatpush1.bf16.msra.mxu0 %v609
    %633 = vmatprep.subr.bf16.mxu0 0
    %634 = vmatpush1.bf16.msra.mxu0 %v610
    %635 = vmatprep.subr.bf16.mxu0 0
    %636 = vmatpush1.bf16.msra.mxu0 0
    %637 = vmatprep.subr.bf16.mxu0 0
    %638 = vmatpush1.bf16.msra.mxu0 0
    %639 = vmatprep.subr.bf16.mxu0 0
    %640 = vmatpush1.bf16.msra.mxu0 0
    %641 = vmatprep.subr.bf16.mxu0 0
    %642 = vmatpush1.bf16.msra.mxu0 0
    %643 = vmatprep.subr.bf16.mxu0 0
    %644 = vmatpush1.bf16.msra.mxu0 0
    %645 = vmatprep.subr.bf16.mxu0 0
    %646 = vmatpush1.bf16.msra.mxu0 0
    %647 = vmatprep.subr.bf16.mxu0 0
    %648 = vmatpush1.bf16.msra.mxu0 0
    %649 = vmatprep.subr.bf16.mxu0 0
    %650 = vmatpush1.bf16.msra.mxu0 0
    %651 = vmatprep.mubr.bf16.mxu0 0
    %652 = vmatmul.mubr.bf16.gmra.mrb[0].mxu0 %v564
    %v653 = vpop.f32.mrb[0].mxu0
    %v654 = vadd.f32 %v569, %v653
    %v655 = vpop.f32.mrb[0].mxu0
    %v656 = vpop.f32.mrb[0].mxu0
    %v657 = vadd.f32 %v569, %v656
    %v658 = vpop.f32.mrb[0].mxu0
    %659 = vdwg.mxu0
    %660 = vadd.xlane.f32.xlu0 %v654
    %v661 = vpop.xlane.xlu0 %660
    %662 = vadd.xlane.f32.xlu0 %v657
    %v663 = vpop.xlane.xlu0 %662
    %v664 = vmul.f32 %v661, 0.03125
    %v665 = vmul.f32 %v663, 0.03125
    %vm666 = vcmp.lt.s32.totalorder %v445, 32
    %v667 = vsub.f32 %v654, %v664
    %v668 = vsub.f32 %v657, %v665
    %v669 = vsel %vm666, %v667, 0.0
    %v670 = vsel %vm666, %v668, 0.0
    %v671 = vmul.f32 %v669, %v669
    %v672 = vmul.f32 %v670, %v670
    %673 = vadd.xlane.f32.xlu0 %v671
    %v674 = vpop.xlane.xlu0 %673
    %675 = vadd.xlane.f32.xlu0 %v672
    %v676 = vpop.xlane.xlu0 %675
    %v677 = vmul.f32 %v674, 0.03125
    %v678 = vmul.f32 %v676, 0.03125
    %v679 = vadd.f32 %v677, 1e-05
    %v680 = vadd.f32 %v678, 1e-05
    %v681 = vrsqrt.pop %v679
    %v682 = vrsqrt.pop %v680
    %v683 = vmul.f32 %v669, %v681
    %v684 = vmul.f32 %v670, %v682
    %v686 = vlaneseq
    %v687 = vshrl.u32 %v686, 7
    %v688 = vsub.s32 0, %v687
    %v689 = vrot.slane %v281, %v688
    %v691 = vmul.f32 %v683, %v689
    %v692 = vmul.f32 %v684, %v689
    %v694 = vlaneseq
    %v695 = vshrl.u32 %v694, 7
    %v696 = vsub.s32 0, %v695
    %v697 = vrot.slane %v282, %v696
    %v699 = vadd.f32 %v691, %v697
    %v700 = vadd.f32 %v692, %v697
    %v701 = vmul.f32 %v699, 0.5
    %v702 = vmul.f32 %v700, 0.5
    %v703 = vmul.f32 %v699, 0.044715
    %v704 = vmul.f32 %v700, 0.044715
    %v705 = vmul.f32 %v703, %v699
    %v706 = vmul.f32 %v704, %v700
    %v707 = vmul.f32 %v705, %v699
    %v708 = vmul.f32 %v706, %v700
    %v709 = vadd.f32 %v699, %v707
    %v710 = vadd.f32 %v700, %v708
    %v711 = vmul.f32 %v709, 0.7978846
    %v712 = vmul.f32 %v710, 0.7978846
    %v713 = vtanh.pop %v711
    %v714 = vtanh.pop %v712
    %v715 = vadd.f32 %v713, 1.0
    %v716 = vadd.f32 %v714, 1.0
    %v717 = vmul.f32 %v701, %v715
    %v718 = vmul.f32 %v702, %v716
    %v719 = vpack.c.bf16 %v718, %v717
    %v721 = vlaneseq
    %v722 = vshrl.u32 %v721, 7
    %v723 = vsub.s32 0, %v722
    %v724 = vrot.slane %v299, %v723
    %v742 = vunpack.c.l.b16 %v283
    %v743 = vunpack.c.l.b16 %v284
    %v744 = vunpack.c.l.b16 %v285
    %v745 = vunpack.c.l.b16 %v286
    %v746 = vunpack.c.l.b16 %v287
    %v747 = vunpack.c.l.b16 %v288
    %v748 = vunpack.c.l.b16 %v289
    %v749 = vunpack.c.l.b16 %v290
    %v750 = vunpack.c.l.b16 %v291
    %v751 = vunpack.c.l.b16 %v292
    %v752 = vunpack.c.l.b16 %v293
    %v753 = vunpack.c.l.b16 %v294
    %v754 = vunpack.c.l.b16 %v295
    %v755 = vunpack.c.l.b16 %v296
    %v756 = vunpack.c.l.b16 %v297
    %v757 = vunpack.c.l.b16 %v298
    %v758 = vpack.c.b16 %v743, %v742
    %v759 = vpack.c.b16 %v745, %v744
    %v760 = vpack.c.b16 %v747, %v746
    %v761 = vpack.c.b16 %v749, %v748
    %v762 = vpack.c.b16 %v751, %v750
    %v763 = vpack.c.b16 %v753, %v752
    %v764 = vpack.c.b16 %v755, %v754
    %v765 = vpack.c.b16 %v757, %v756
    %774 = vmatprep.subr.bf16.mxu0 0
    %775 = vmatpush1.bf16.msra.mxu0 %v758
    %776 = vmatprep.subr.bf16.mxu0 0
    %777 = vmatpush1.bf16.msra.mxu0 %v759
    %778 = vmatprep.subr.bf16.mxu0 0
    %779 = vmatpush1.bf16.msra.mxu0 %v760
    %780 = vmatprep.subr.bf16.mxu0 0
    %781 = vmatpush1.bf16.msra.mxu0 %v761
    %782 = vmatprep.subr.bf16.mxu0 0
    %783 = vmatpush1.bf16.msra.mxu0 %v762
    %784 = vmatprep.subr.bf16.mxu0 0
    %785 = vmatpush1.bf16.msra.mxu0 %v763
    %786 = vmatprep.subr.bf16.mxu0 0
    %787 = vmatpush1.bf16.msra.mxu0 %v764
    %788 = vmatprep.subr.bf16.mxu0 0
    %789 = vmatpush1.bf16.msra.mxu0 %v765
    %790 = vmatprep.subr.bf16.mxu0 0
    %791 = vmatpush1.bf16.msra.mxu0 0
    %792 = vmatprep.subr.bf16.mxu0 0
    %793 = vmatpush1.bf16.msra.mxu0 0
    %794 = vmatprep.subr.bf16.mxu0 0
    %795 = vmatpush1.bf16.msra.mxu0 0
    %796 = vmatprep.subr.bf16.mxu0 0
    %797 = vmatpush1.bf16.msra.mxu0 0
    %798 = vmatprep.subr.bf16.mxu0 0
    %799 = vmatpush1.bf16.msra.mxu0 0
    %800 = vmatprep.subr.bf16.mxu0 0
    %801 = vmatpush1.bf16.msra.mxu0 0
    %802 = vmatprep.subr.bf16.mxu0 0
    %803 = vmatpush1.bf16.msra.mxu0 0
    %804 = vmatprep.subr.bf16.mxu0 0
    %805 = vmatpush1.bf16.msra.mxu0 0
    %806 = vmatprep.mubr.bf16.mxu0 0
    %807 = vmatmul.mubr.bf16.gmra.mrb[0].mxu0 %v719
    %v808 = vpop.f32.mrb[0].mxu0
    %v809 = vadd.f32 %v724, %v808
    %v810 = vpop.f32.mrb[0].mxu0
    %v811 = vpop.f32.mrb[0].mxu0
    %v812 = vadd.f32 %v724, %v811
    %v813 = vpop.f32.mrb[0].mxu0
    %814 = vdwg.mxu0
    %815 = vadd.xlane.f32.xlu0 %v809
    %v816 = vpop.xlane.xlu0 %815
    %817 = vadd.xlane.f32.xlu0 %v812
    %v818 = vpop.xlane.xlu0 %817
    %v819 = vmul.f32 %v816, 0.020833334
    %v820 = vmul.f32 %v818, 0.020833334
    %vm821 = vcmp.lt.s32.totalorder %v445, 48
    %v822 = vsub.f32 %v809, %v819
    %v823 = vsub.f32 %v812, %v820
    %v824 = vsel %vm821, %v822, 0.0
    %v825 = vsel %vm821, %v823, 0.0
    %v826 = vmul.f32 %v824, %v824
    %v827 = vmul.f32 %v825, %v825
    %828 = vadd.xlane.f32.xlu0 %v826
    %v829 = vpop.xlane.xlu0 %828
    %830 = vadd.xlane.f32.xlu0 %v827
    %v831 = vpop.xlane.xlu0 %830
    %v832 = vmul.f32 %v829, 0.020833334
    %v833 = vmul.f32 %v831, 0.020833334
    %v834 = vadd.f32 %v832, 1e-05
    %v835 = vadd.f32 %v833, 1e-05
    %v836 = vrsqrt.pop %v834
    %v837 = vrsqrt.pop %v835
    %v838 = vmul.f32 %v824, %v836
    %v839 = vmul.f32 %v825, %v837
    %v841 = vlaneseq
    %v842 = vshrl.u32 %v841, 7
    %v843 = vsub.s32 0, %v842
    %v844 = vrot.slane %v300, %v843
    %v846 = vmul.f32 %v838, %v844
    %v847 = vmul.f32 %v839, %v844
    %v849 = vlaneseq
    %v850 = vshrl.u32 %v849, 7
    %v851 = vsub.s32 0, %v850
    %v852 = vrot.slane %v301, %v851
    %v854 = vadd.f32 %v846, %v852
    %v855 = vadd.f32 %v847, %v852
    %v856 = vmul.f32 %v854, 0.5
    %v857 = vmul.f32 %v855, 0.5
    %v858 = vmul.f32 %v854, 0.044715
    %v859 = vmul.f32 %v855, 0.044715
    %v860 = vmul.f32 %v858, %v854
    %v861 = vmul.f32 %v859, %v855
    %v862 = vmul.f32 %v860, %v854
    %v863 = vmul.f32 %v861, %v855
    %v864 = vadd.f32 %v854, %v862
    %v865 = vadd.f32 %v855, %v863
    %v866 = vmul.f32 %v864, 0.7978846
    %v867 = vmul.f32 %v865, 0.7978846
    %v868 = vtanh.pop %v866
    %v869 = vtanh.pop %v867
    %v870 = vadd.f32 %v868, 1.0
    %v871 = vadd.f32 %v869, 1.0
    %v872 = vmul.f32 %v856, %v870
    %v873 = vmul.f32 %v857, %v871
    %v874 = vpack.c.bf16 %v873, %v872
    %v891 = vunpack.c.l.b16 %v318
    %v892 = vunpack.c.l.b16 %v319
    %v893 = vunpack.c.l.b16 %v320
    %v894 = vunpack.c.l.b16 %v321
    %v895 = vunpack.c.l.b16 %v322
    %v896 = vunpack.c.l.b16 %v323
    %v897 = vunpack.c.l.b16 %v324
    %v898 = vunpack.c.l.b16 %v325
    %v899 = vunpack.c.l.b16 %v326
    %v900 = vunpack.c.l.b16 %v327
    %v901 = vunpack.c.l.b16 %v328
    %v902 = vunpack.c.l.b16 %v329
    %v903 = vunpack.c.l.b16 %v330
    %v904 = vunpack.c.l.b16 %v331
    %v905 = vunpack.c.l.b16 %v332
    %v906 = vunpack.c.l.b16 %v333
    %v907 = vpack.c.b16 %v892, %v891
    %v908 = vpack.c.b16 %v894, %v893
    %v909 = vpack.c.b16 %v896, %v895
    %v910 = vpack.c.b16 %v898, %v897
    %v911 = vpack.c.b16 %v900, %v899
    %v912 = vpack.c.b16 %v902, %v901
    %v913 = vpack.c.b16 %v904, %v903
    %v914 = vpack.c.b16 %v906, %v905
    %923 = vmatprep.subr.bf16.mxu0 0
    %924 = vmatpush1.bf16.msra.mxu0 %v907
    %925 = vmatprep.subr.bf16.mxu0 0
    %926 = vmatpush1.bf16.msra.mxu0 %v908
    %927 = vmatprep.subr.bf16.mxu0 0
    %928 = vmatpush1.bf16.msra.mxu0 %v909
    %929 = vmatprep.subr.bf16.mxu0 0
    %930 = vmatpush1.bf16.msra.mxu0 %v910
    %931 = vmatprep.subr.bf16.mxu0 0
    %932 = vmatpush1.bf16.msra.mxu0 %v911
    %933 = vmatprep.subr.bf16.mxu0 0
    %934 = vmatpush1.bf16.msra.mxu0 %v912
    %935 = vmatprep.subr.bf16.mxu0 0
    %936 = vmatpush1.bf16.msra.mxu0 %v913
    %937 = vmatprep.subr.bf16.mxu0 0
    %938 = vmatpush1.bf16.msra.mxu0 %v914
    %939 = vmatprep.subr.bf16.mxu0 0
    %940 = vmatpush1.bf16.msra.mxu0 0
    %941 = vmatprep.subr.bf16.mxu0 0
    %942 = vmatpush1.bf16.msra.mxu0 0
    %943 = vmatprep.subr.bf16.mxu0 0
    %944 = vmatpush1.bf16.msra.mxu0 0
    %945 = vmatprep.subr.bf16.mxu0 0
    %946 = vmatpush1.bf16.msra.mxu0 0
    %947 = vmatprep.subr.bf16.mxu0 0
    %948 = vmatpush1.bf16.msra.mxu0 0
    %949 = vmatprep.subr.bf16.mxu0 0
    %950 = vmatpush1.bf16.msra.mxu0 0
    %951 = vmatprep.subr.bf16.mxu0 0
    %952 = vmatpush1.bf16.msra.mxu0 0
    %953 = vmatprep.subr.bf16.mxu0 0
    %954 = vmatpush1.bf16.msra.mxu0 0
    %955 = vmatprep.mubr.bf16.mxu0 0
    %956 = vmatmul.mubr.bf16.gmra.mrb[0].mxu0 %v874
    %v957 = vpop.f32.mrb[0].mxu0
    %v958 = vadd.f32 0.0, %v957
    %v959 = vpop.f32.mrb[0].mxu0
    %v960 = vpop.f32.mrb[0].mxu0
    %v961 = vadd.f32 0.0, %v960
    %v962 = vpop.f32.mrb[0].mxu0
    %963 = vdwg.mxu0
    %v980 = vunpack.c.l.b16 %v302
    %v981 = vunpack.c.l.b16 %v303
    %v982 = vunpack.c.l.b16 %v304
    %v983 = vunpack.c.l.b16 %v305
    %v984 = vunpack.c.l.b16 %v306
    %v985 = vunpack.c.l.b16 %v307
    %v986 = vunpack.c.l.b16 %v308
    %v987 = vunpack.c.l.b16 %v309
    %v988 = vunpack.c.l.b16 %v310
    %v989 = vunpack.c.l.b16 %v311
    %v990 = vunpack.c.l.b16 %v312
    %v991 = vunpack.c.l.b16 %v313
    %v992 = vunpack.c.l.b16 %v314
    %v993 = vunpack.c.l.b16 %v315
    %v994 = vunpack.c.l.b16 %v316
    %v995 = vunpack.c.l.b16 %v317
    %v996 = vpack.c.b16 %v981, %v980
    %v997 = vpack.c.b16 %v983, %v982
    %v998 = vpack.c.b16 %v985, %v984
    %v999 = vpack.c.b16 %v987, %v986
    %v1000 = vpack.c.b16 %v989, %v988
    %v1001 = vpack.c.b16 %v991, %v990
    %v1002 = vpack.c.b16 %v993, %v992
    %v1003 = vpack.c.b16 %v995, %v994
    %1012 = vmatprep.subr.bf16.mxu0 0
    %1013 = vmatpush1.bf16.msra.mxu0 %v996
    %1014 = vmatprep.subr.bf16.mxu0 0
    %1015 = vmatpush1.bf16.msra.mxu0 %v997
    %1016 = vmatprep.subr.bf16.mxu0 0
    %1017 = vmatpush1.bf16.msra.mxu0 %v998
    %1018 = vmatprep.subr.bf16.mxu0 0
    %1019 = vmatpush1.bf16.msra.mxu0 %v999
    %1020 = vmatprep.subr.bf16.mxu0 0
    %1021 = vmatpush1.bf16.msra.mxu0 %v1000
    %1022 = vmatprep.subr.bf16.mxu0 0
    %1023 = vmatpush1.bf16.msra.mxu0 %v1001
    %1024 = vmatprep.subr.bf16.mxu0 0
    %1025 = vmatpush1.bf16.msra.mxu0 %v1002
    %1026 = vmatprep.subr.bf16.mxu0 0
    %1027 = vmatpush1.bf16.msra.mxu0 %v1003
    %1028 = vmatprep.subr.bf16.mxu0 0
    %1029 = vmatpush1.bf16.msra.mxu0 0
    %1030 = vmatprep.subr.bf16.mxu0 0
    %1031 = vmatpush1.bf16.msra.mxu0 0
    %1032 = vmatprep.subr.bf16.mxu0 0
    %1033 = vmatpush1.bf16.msra.mxu0 0
    %1034 = vmatprep.subr.bf16.mxu0 0
    %1035 = vmatpush1.bf16.msra.mxu0 0
    %1036 = vmatprep.subr.bf16.mxu0 0
    %1037 = vmatpush1.bf16.msra.mxu0 0
    %1038 = vmatprep.subr.bf16.mxu0 0
    %1039 = vmatpush1.bf16.msra.mxu0 0
    %1040 = vmatprep.subr.bf16.mxu0 0
    %1041 = vmatpush1.bf16.msra.mxu0 0
    %1042 = vmatprep.subr.bf16.mxu0 0
    %1043 = vmatpush1.bf16.msra.mxu0 0
    %1044 = vmatprep.mubr.bf16.mxu0 0
    %1045 = vmatmul.mubr.bf16.gmra.mrb[0].mxu0 %v719
    %v1046 = vpop.f32.mrb[0].mxu0
    %v1047 = vadd.f32 %v958, %v1046
    %v1048 = vpop.f32.mrb[0].mxu0
    %v1049 = vpop.f32.mrb[0].mxu0
    %v1050 = vadd.f32 %v961, %v1049
    %v1051 = vpop.f32.mrb[0].mxu0
    %1052 = vdwg.mxu0
    %v1054 = vlaneseq
    %v1055 = vshrl.u32 %v1054, 7
    %v1056 = vsub.s32 0, %v1055
    %v1057 = vrot.slane %v334, %v1056
    %v1059 = vadd.f32 %v1047, %v1057
    %v1060 = vadd.f32 %v1050, %v1057
    %1061 = vadd.xlane.f32.xlu0 %v1059
    %v1062 = vpop.xlane.xlu0 %1061
    %1063 = vadd.xlane.f32.xlu0 %v1060
    %v1064 = vpop.xlane.xlu0 %1063
    %v1065 = vmul.f32 %v1062, 0.015625
    %v1066 = vmul.f32 %v1064, 0.015625
    %vm1067 = vcmp.lt.s32.totalorder %v445, 64
    %v1068 = vsub.f32 %v1059, %v1065
    %v1069 = vsub.f32 %v1060, %v1066
    %v1070 = vsel %vm1067, %v1068, 0.0
    %v1071 = vsel %vm1067, %v1069, 0.0
    %v1072 = vmul.f32 %v1070, %v1070
    %v1073 = vmul.f32 %v1071, %v1071
    %1074 = vadd.xlane.f32.xlu0 %v1072
    %v1075 = vpop.xlane.xlu0 %1074
    %1076 = vadd.xlane.f32.xlu0 %v1073
    %v1077 = vpop.xlane.xlu0 %1076
    %v1078 = vmul.f32 %v1075, 0.015625
    %v1079 = vmul.f32 %v1077, 0.015625
    %v1080 = vadd.f32 %v1078, 1e-05
    %v1081 = vadd.f32 %v1079, 1e-05
    %v1082 = vrsqrt.pop %v1080
    %v1083 = vrsqrt.pop %v1081
    %v1084 = vmul.f32 %v1070, %v1082
    %v1085 = vmul.f32 %v1071, %v1083
    %v1087 = vlaneseq
    %v1088 = vshrl.u32 %v1087, 7
    %v1089 = vsub.s32 0, %v1088
    %v1090 = vrot.slane %v335, %v1089
    %v1092 = vmul.f32 %v1084, %v1090
    %v1093 = vmul.f32 %v1085, %v1090
    %v1095 = vlaneseq
    %v1096 = vshrl.u32 %v1095, 7
    %v1097 = vsub.s32 0, %v1096
    %v1098 = vrot.slane %v336, %v1097
    %v1100 = vadd.f32 %v1092, %v1098
    %v1101 = vadd.f32 %v1093, %v1098
    %v1102 = vmul.f32 %v1100, 0.5
    %v1103 = vmul.f32 %v1101, 0.5
    %v1104 = vmul.f32 %v1100, 0.044715
    %v1105 = vmul.f32 %v1101, 0.044715
    %v1106 = vmul.f32 %v1104, %v1100
    %v1107 = vmul.f32 %v1105, %v1101
    %v1108 = vmul.f32 %v1106, %v1100
    %v1109 = vmul.f32 %v1107, %v1101
    %v1110 = vadd.f32 %v1100, %v1108
    %v1111 = vadd.f32 %v1101, %v1109
    %v1112 = vmul.f32 %v1110, 0.7978846
    %v1113 = vmul.f32 %v1111, 0.7978846
    %v1114 = vtanh.pop %v1112
    %v1115 = vtanh.pop %v1113
    %v1116 = vadd.f32 %v1114, 1.0
    %v1117 = vadd.f32 %v1115, 1.0
    %v1118 = vmul.f32 %v1102, %v1116
    %v1119 = vmul.f32 %v1103, %v1117
    %v1120 = vpack.c.bf16 %v1119, %v1118
    %v1137 = vunpack.c.l.b16 %v353
    %v1138 = vunpack.c.l.b16 %v354
    %v1139 = vunpack.c.l.b16 %v355
    %v1140 = vunpack.c.l.b16 %v356
    %v1141 = vunpack.c.l.b16 %v357
    %v1142 = vunpack.c.l.b16 %v358
    %v1143 = vunpack.c.l.b16 %v359
    %v1144 = vunpack.c.l.b16 %v360
    %v1145 = vunpack.c.l.b16 %v361
    %v1146 = vunpack.c.l.b16 %v362
    %v1147 = vunpack.c.l.b16 %v363
    %v1148 = vunpack.c.l.b16 %v364
    %v1149 = vunpack.c.l.b16 %v365
    %v1150 = vunpack.c.l.b16 %v366
    %v1151 = vunpack.c.l.b16 %v367
    %v1152 = vunpack.c.l.b16 %v368
    %v1153 = vpack.c.b16 %v1138, %v1137
    %v1154 = vpack.c.b16 %v1140, %v1139
    %v1155 = vpack.c.b16 %v1142, %v1141
    %v1156 = vpack.c.b16 %v1144, %v1143
    %v1157 = vpack.c.b16 %v1146, %v1145
    %v1158 = vpack.c.b16 %v1148, %v1147
    %v1159 = vpack.c.b16 %v1150, %v1149
    %v1160 = vpack.c.b16 %v1152, %v1151
    %1169 = vmatprep.subr.bf16.mxu0 0
    %1170 = vmatpush1.bf16.msra.mxu0 %v1153
    %1171 = vmatprep.subr.bf16.mxu0 0
    %1172 = vmatpush1.bf16.msra.mxu0 %v1154
    %1173 = vmatprep.subr.bf16.mxu0 0
    %1174 = vmatpush1.bf16.msra.mxu0 %v1155
    %1175 = vmatprep.subr.bf16.mxu0 0
    %1176 = vmatpush1.bf16.msra.mxu0 %v1156
    %1177 = vmatprep.subr.bf16.mxu0 0
    %1178 = vmatpush1.bf16.msra.mxu0 %v1157
    %1179 = vmatprep.subr.bf16.mxu0 0
    %1180 = vmatpush1.bf16.msra.mxu0 %v1158
    %1181 = vmatprep.subr.bf16.mxu0 0
    %1182 = vmatpush1.bf16.msra.mxu0 %v1159
    %1183 = vmatprep.subr.bf16.mxu0 0
    %1184 = vmatpush1.bf16.msra.mxu0 %v1160
    %1185 = vmatprep.subr.bf16.mxu0 0
    %1186 = vmatpush1.bf16.msra.mxu0 0
    %1187 = vmatprep.subr.bf16.mxu0 0
    %1188 = vmatpush1.bf16.msra.mxu0 0
    %1189 = vmatprep.subr.bf16.mxu0 0
    %1190 = vmatpush1.bf16.msra.mxu0 0
    %1191 = vmatprep.subr.bf16.mxu0 0
    %1192 = vmatpush1.bf16.msra.mxu0 0
    %1193 = vmatprep.subr.bf16.mxu0 0
    %1194 = vmatpush1.bf16.msra.mxu0 0
    %1195 = vmatprep.subr.bf16.mxu0 0
    %1196 = vmatpush1.bf16.msra.mxu0 0
    %1197 = vmatprep.subr.bf16.mxu0 0
    %1198 = vmatpush1.bf16.msra.mxu0 0
    %1199 = vmatprep.subr.bf16.mxu0 0
    %1200 = vmatpush1.bf16.msra.mxu0 0
    %1201 = vmatprep.mubr.bf16.mxu0 0
    %1202 = vmatmul.mubr.bf16.gmra.mrb[0].mxu0 %v1120
    %v1203 = vpop.f32.mrb[0].mxu0
    %v1204 = vadd.f32 0.0, %v1203
    %v1205 = vpop.f32.mrb[0].mxu0
    %v1206 = vpop.f32.mrb[0].mxu0
    %v1207 = vadd.f32 0.0, %v1206
    %v1208 = vpop.f32.mrb[0].mxu0
    %1209 = vdwg.mxu0
    %v1226 = vunpack.c.l.b16 %v337
    %v1227 = vunpack.c.l.b16 %v338
    %v1228 = vunpack.c.l.b16 %v339
    %v1229 = vunpack.c.l.b16 %v340
    %v1230 = vunpack.c.l.b16 %v341
    %v1231 = vunpack.c.l.b16 %v342
    %v1232 = vunpack.c.l.b16 %v343
    %v1233 = vunpack.c.l.b16 %v344
    %v1234 = vunpack.c.l.b16 %v345
    %v1235 = vunpack.c.l.b16 %v346
    %v1236 = vunpack.c.l.b16 %v347
    %v1237 = vunpack.c.l.b16 %v348
    %v1238 = vunpack.c.l.b16 %v349
    %v1239 = vunpack.c.l.b16 %v350
    %v1240 = vunpack.c.l.b16 %v351
    %v1241 = vunpack.c.l.b16 %v352
    %v1242 = vpack.c.b16 %v1227, %v1226
    %v1243 = vpack.c.b16 %v1229, %v1228
    %v1244 = vpack.c.b16 %v1231, %v1230
    %v1245 = vpack.c.b16 %v1233, %v1232
    %v1246 = vpack.c.b16 %v1235, %v1234
    %v1247 = vpack.c.b16 %v1237, %v1236
    %v1248 = vpack.c.b16 %v1239, %v1238
    %v1249 = vpack.c.b16 %v1241, %v1240
    %1258 = vmatprep.subr.bf16.mxu0 0
    %1259 = vmatpush1.bf16.msra.mxu0 %v1242
    %1260 = vmatprep.subr.bf16.mxu0 0
    %1261 = vmatpush1.bf16.msra.mxu0 %v1243
    %1262 = vmatprep.subr.bf16.mxu0 0
    %1263 = vmatpush1.bf16.msra.mxu0 %v1244
    %1264 = vmatprep.subr.bf16.mxu0 0
    %1265 = vmatpush1.bf16.msra.mxu0 %v1245
    %1266 = vmatprep.subr.bf16.mxu0 0
    %1267 = vmatpush1.bf16.msra.mxu0 %v1246
    %1268 = vmatprep.subr.bf16.mxu0 0
    %1269 = vmatpush1.bf16.msra.mxu0 %v1247
    %1270 = vmatprep.subr.bf16.mxu0 0
    %1271 = vmatpush1.bf16.msra.mxu0 %v1248
    %1272 = vmatprep.subr.bf16.mxu0 0
    %1273 = vmatpush1.bf16.msra.mxu0 %v1249
    %1274 = vmatprep.subr.bf16.mxu0 0
    %1275 = vmatpush1.bf16.msra.mxu0 0
    %1276 = vmatprep.subr.bf16.mxu0 0
    %1277 = vmatpush1.bf16.msra.mxu0 0
    %1278 = vmatprep.subr.bf16.mxu0 0
    %1279 = vmatpush1.bf16.msra.mxu0 0
    %1280 = vmatprep.subr.bf16.mxu0 0
    %1281 = vmatpush1.bf16.msra.mxu0 0
    %1282 = vmatprep.subr.bf16.mxu0 0
    %1283 = vmatpush1.bf16.msra.mxu0 0
    %1284 = vmatprep.subr.bf16.mxu0 0
    %1285 = vmatpush1.bf16.msra.mxu0 0
    %1286 = vmatprep.subr.bf16.mxu0 0
    %1287 = vmatpush1.bf16.msra.mxu0 0
    %1288 = vmatprep.subr.bf16.mxu0 0
    %1289 = vmatpush1.bf16.msra.mxu0 0
    %1290 = vmatprep.mubr.bf16.mxu0 0
    %1291 = vmatmul.mubr.bf16.gmra.mrb[0].mxu0 %v719
    %v1292 = vpop.f32.mrb[0].mxu0
    %v1293 = vadd.f32 %v1204, %v1292
    %v1294 = vpop.f32.mrb[0].mxu0
    %v1295 = vpop.f32.mrb[0].mxu0
    %v1296 = vadd.f32 %v1207, %v1295
    %v1297 = vpop.f32.mrb[0].mxu0
    %1298 = vdwg.mxu0
    %v1300 = vlaneseq
    %v1301 = vshrl.u32 %v1300, 7
    %v1302 = vsub.s32 0, %v1301
    %v1303 = vrot.slane %v369, %v1302
    %v1305 = vadd.f32 %v1293, %v1303
    %v1306 = vadd.f32 %v1296, %v1303
    %1307 = vadd.xlane.f32.xlu0 %v1305
    %v1308 = vpop.xlane.xlu0 %1307
    %1309 = vadd.xlane.f32.xlu0 %v1306
    %v1310 = vpop.xlane.xlu0 %1309
    %v1311 = vmul.f32 %v1308, 0.020833334
    %v1312 = vmul.f32 %v1310, 0.020833334
    %v1313 = vsub.f32 %v1305, %v1311
    %v1314 = vsub.f32 %v1306, %v1312
    %v1315 = vsel %vm821, %v1313, 0.0
    %v1316 = vsel %vm821, %v1314, 0.0
    %v1317 = vmul.f32 %v1315, %v1315
    %v1318 = vmul.f32 %v1316, %v1316
    %1319 = vadd.xlane.f32.xlu0 %v1317
    %v1320 = vpop.xlane.xlu0 %1319
    %1321 = vadd.xlane.f32.xlu0 %v1318
    %v1322 = vpop.xlane.xlu0 %1321
    %v1323 = vmul.f32 %v1320, 0.020833334
    %v1324 = vmul.f32 %v1322, 0.020833334
    %v1325 = vadd.f32 %v1323, 1e-05
    %v1326 = vadd.f32 %v1324, 1e-05
    %v1327 = vrsqrt.pop %v1325
    %v1328 = vrsqrt.pop %v1326
    %v1329 = vmul.f32 %v1315, %v1327
    %v1330 = vmul.f32 %v1316, %v1328
    %v1332 = vlaneseq
    %v1333 = vshrl.u32 %v1332, 7
    %v1334 = vsub.s32 0, %v1333
    %v1335 = vrot.slane %v370, %v1334
    %v1337 = vmul.f32 %v1329, %v1335
    %v1338 = vmul.f32 %v1330, %v1335
    %v1340 = vlaneseq
    %v1341 = vshrl.u32 %v1340, 7
    %v1342 = vsub.s32 0, %v1341
    %v1343 = vrot.slane %v371, %v1342
    %v1345 = vadd.f32 %v1337, %v1343
    %v1346 = vadd.f32 %v1338, %v1343
    %v1347 = vmul.f32 %v1345, 0.5
    %v1348 = vmul.f32 %v1346, 0.5
    %v1349 = vmul.f32 %v1345, 0.044715
    %v1350 = vmul.f32 %v1346, 0.044715
    %v1351 = vmul.f32 %v1349, %v1345
    %v1352 = vmul.f32 %v1350, %v1346
    %v1353 = vmul.f32 %v1351, %v1345
    %v1354 = vmul.f32 %v1352, %v1346
    %v1355 = vadd.f32 %v1345, %v1353
    %v1356 = vadd.f32 %v1346, %v1354
    %v1357 = vmul.f32 %v1355, 0.7978846
    %v1358 = vmul.f32 %v1356, 0.7978846
    %v1359 = vtanh.pop %v1357
    %v1360 = vtanh.pop %v1358
    %v1361 = vadd.f32 %v1359, 1.0
    %v1362 = vadd.f32 %v1360, 1.0
    %v1363 = vmul.f32 %v1347, %v1361
    %v1364 = vmul.f32 %v1348, %v1362
    %v1365 = vpack.c.bf16 %v1364, %v1363
    %v1382 = vunpack.c.l.b16 %v388
    %v1383 = vunpack.c.l.b16 %v389
    %v1384 = vunpack.c.l.b16 %v390
    %v1385 = vunpack.c.l.b16 %v391
    %v1386 = vunpack.c.l.b16 %v392
    %v1387 = vunpack.c.l.b16 %v393
    %v1388 = vunpack.c.l.b16 %v394
    %v1389 = vunpack.c.l.b16 %v395
    %v1390 = vunpack.c.l.b16 %v396
    %v1391 = vunpack.c.l.b16 %v397
    %v1392 = vunpack.c.l.b16 %v398
    %v1393 = vunpack.c.l.b16 %v399
    %v1394 = vunpack.c.l.b16 %v400
    %v1395 = vunpack.c.l.b16 %v401
    %v1396 = vunpack.c.l.b16 %v402
    %v1397 = vunpack.c.l.b16 %v403
    %v1398 = vpack.c.b16 %v1383, %v1382
    %v1399 = vpack.c.b16 %v1385, %v1384
    %v1400 = vpack.c.b16 %v1387, %v1386
    %v1401 = vpack.c.b16 %v1389, %v1388
    %v1402 = vpack.c.b16 %v1391, %v1390
    %v1403 = vpack.c.b16 %v1393, %v1392
    %v1404 = vpack.c.b16 %v1395, %v1394
    %v1405 = vpack.c.b16 %v1397, %v1396
    %1414 = vmatprep.subr.bf16.mxu0 0
    %1415 = vmatpush1.bf16.msra.mxu0 %v1398
    %1416 = vmatprep.subr.bf16.mxu0 0
    %1417 = vmatpush1.bf16.msra.mxu0 %v1399
    %1418 = vmatprep.subr.bf16.mxu0 0
    %1419 = vmatpush1.bf16.msra.mxu0 %v1400
    %1420 = vmatprep.subr.bf16.mxu0 0
    %1421 = vmatpush1.bf16.msra.mxu0 %v1401
    %1422 = vmatprep.subr.bf16.mxu0 0
    %1423 = vmatpush1.bf16.msra.mxu0 %v1402
    %1424 = vmatprep.subr.bf16.mxu0 0
    %1425 = vmatpush1.bf16.msra.mxu0 %v1403
    %1426 = vmatprep.subr.bf16.mxu0 0
    %1427 = vmatpush1.bf16.msra.mxu0 %v1404
    %1428 = vmatprep.subr.bf16.mxu0 0
    %1429 = vmatpush1.bf16.msra.mxu0 %v1405
    %1430 = vmatprep.subr.bf16.mxu0 0
    %1431 = vmatpush1.bf16.msra.mxu0 0
    %1432 = vmatprep.subr.bf16.mxu0 0
    %1433 = vmatpush1.bf16.msra.mxu0 0
    %1434 = vmatprep.subr.bf16.mxu0 0
    %1435 = vmatpush1.bf16.msra.mxu0 0
    %1436 = vmatprep.subr.bf16.mxu0 0
    %1437 = vmatpush1.bf16.msra.mxu0 0
    %1438 = vmatprep.subr.bf16.mxu0 0
    %1439 = vmatpush1.bf16.msra.mxu0 0
    %1440 = vmatprep.subr.bf16.mxu0 0
    %1441 = vmatpush1.bf16.msra.mxu0 0
    %1442 = vmatprep.subr.bf16.mxu0 0
    %1443 = vmatpush1.bf16.msra.mxu0 0
    %1444 = vmatprep.subr.bf16.mxu0 0
    %1445 = vmatpush1.bf16.msra.mxu0 0
    %1446 = vmatprep.mubr.bf16.mxu0 0
    %1447 = vmatmul.mubr.bf16.gmra.mrb[0].mxu0 %v1365
    %v1448 = vpop.f32.mrb[0].mxu0
    %v1449 = vadd.f32 0.0, %v1448
    %v1450 = vpop.f32.mrb[0].mxu0
    %v1451 = vpop.f32.mrb[0].mxu0
    %v1452 = vadd.f32 0.0, %v1451
    %v1453 = vpop.f32.mrb[0].mxu0
    %1454 = vdwg.mxu0
    %v1471 = vunpack.c.l.b16 %v372
    %v1472 = vunpack.c.l.b16 %v373
    %v1473 = vunpack.c.l.b16 %v374
    %v1474 = vunpack.c.l.b16 %v375
    %v1475 = vunpack.c.l.b16 %v376
    %v1476 = vunpack.c.l.b16 %v377
    %v1477 = vunpack.c.l.b16 %v378
    %v1478 = vunpack.c.l.b16 %v379
    %v1479 = vunpack.c.l.b16 %v380
    %v1480 = vunpack.c.l.b16 %v381
    %v1481 = vunpack.c.l.b16 %v382
    %v1482 = vunpack.c.l.b16 %v383
    %v1483 = vunpack.c.l.b16 %v384
    %v1484 = vunpack.c.l.b16 %v385
    %v1485 = vunpack.c.l.b16 %v386
    %v1486 = vunpack.c.l.b16 %v387
    %v1487 = vpack.c.b16 %v1472, %v1471
    %v1488 = vpack.c.b16 %v1474, %v1473
    %v1489 = vpack.c.b16 %v1476, %v1475
    %v1490 = vpack.c.b16 %v1478, %v1477
    %v1491 = vpack.c.b16 %v1480, %v1479
    %v1492 = vpack.c.b16 %v1482, %v1481
    %v1493 = vpack.c.b16 %v1484, %v1483
    %v1494 = vpack.c.b16 %v1486, %v1485
    %1503 = vmatprep.subr.bf16.mxu0 0
    %1504 = vmatpush1.bf16.msra.mxu0 %v1487
    %1505 = vmatprep.subr.bf16.mxu0 0
    %1506 = vmatpush1.bf16.msra.mxu0 %v1488
    %1507 = vmatprep.subr.bf16.mxu0 0
    %1508 = vmatpush1.bf16.msra.mxu0 %v1489
    %1509 = vmatprep.subr.bf16.mxu0 0
    %1510 = vmatpush1.bf16.msra.mxu0 %v1490
    %1511 = vmatprep.subr.bf16.mxu0 0
    %1512 = vmatpush1.bf16.msra.mxu0 %v1491
    %1513 = vmatprep.subr.bf16.mxu0 0
    %1514 = vmatpush1.bf16.msra.mxu0 %v1492
    %1515 = vmatprep.subr.bf16.mxu0 0
    %1516 = vmatpush1.bf16.msra.mxu0 %v1493
    %1517 = vmatprep.subr.bf16.mxu0 0
    %1518 = vmatpush1.bf16.msra.mxu0 %v1494
    %1519 = vmatprep.subr.bf16.mxu0 0
    %1520 = vmatpush1.bf16.msra.mxu0 0
    %1521 = vmatprep.subr.bf16.mxu0 0
    %1522 = vmatpush1.bf16.msra.mxu0 0
    %1523 = vmatprep.subr.bf16.mxu0 0
    %1524 = vmatpush1.bf16.msra.mxu0 0
    %1525 = vmatprep.subr.bf16.mxu0 0
    %1526 = vmatpush1.bf16.msra.mxu0 0
    %1527 = vmatprep.subr.bf16.mxu0 0
    %1528 = vmatpush1.bf16.msra.mxu0 0
    %1529 = vmatprep.subr.bf16.mxu0 0
    %1530 = vmatpush1.bf16.msra.mxu0 0
    %1531 = vmatprep.subr.bf16.mxu0 0
    %1532 = vmatpush1.bf16.msra.mxu0 0
    %1533 = vmatprep.subr.bf16.mxu0 0
    %1534 = vmatpush1.bf16.msra.mxu0 0
    %1535 = vmatprep.mubr.bf16.mxu0 0
    %1536 = vmatmul.mubr.bf16.gmra.mrb[0].mxu0 %v719
    %v1537 = vpop.f32.mrb[0].mxu0
    %v1538 = vadd.f32 %v1449, %v1537
    %v1539 = vpop.f32.mrb[0].mxu0
    %v1540 = vpop.f32.mrb[0].mxu0
    %v1541 = vadd.f32 %v1452, %v1540
    %v1542 = vpop.f32.mrb[0].mxu0
    %1543 = vdwg.mxu0
    %v1545 = vlaneseq
    %v1546 = vshrl.u32 %v1545, 7
    %v1547 = vsub.s32 0, %v1546
    %v1548 = vrot.slane %v404, %v1547
    %v1550 = vadd.f32 %v1538, %v1548
    %v1551 = vadd.f32 %v1541, %v1548
    %1552 = vadd.xlane.f32.xlu0 %v1550
    %v1553 = vpop.xlane.xlu0 %1552
    %1554 = vadd.xlane.f32.xlu0 %v1551
    %v1555 = vpop.xlane.xlu0 %1554
    %v1556 = vmul.f32 %v1553, 0.03125
    %v1557 = vmul.f32 %v1555, 0.03125
    %v1558 = vsub.f32 %v1550, %v1556
    %v1559 = vsub.f32 %v1551, %v1557
    %v1560 = vsel %vm666, %v1558, 0.0
    %v1561 = vsel %vm666, %v1559, 0.0
    %v1562 = vmul.f32 %v1560, %v1560
    %v1563 = vmul.f32 %v1561, %v1561
    %1564 = vadd.xlane.f32.xlu0 %v1562
    %v1565 = vpop.xlane.xlu0 %1564
    %1566 = vadd.xlane.f32.xlu0 %v1563
    %v1567 = vpop.xlane.xlu0 %1566
    %v1568 = vmul.f32 %v1565, 0.03125
    %v1569 = vmul.f32 %v1567, 0.03125
    %v1570 = vadd.f32 %v1568, 1e-05
    %v1571 = vadd.f32 %v1569, 1e-05
    %v1572 = vrsqrt.pop %v1570
    %v1573 = vrsqrt.pop %v1571
    %v1574 = vmul.f32 %v1560, %v1572
    %v1575 = vmul.f32 %v1561, %v1573
    %v1577 = vlaneseq
    %v1578 = vshrl.u32 %v1577, 7
    %v1579 = vsub.s32 0, %v1578
    %v1580 = vrot.slane %v405, %v1579
    %v1582 = vmul.f32 %v1574, %v1580
    %v1583 = vmul.f32 %v1575, %v1580
    %v1585 = vlaneseq
    %v1586 = vshrl.u32 %v1585, 7
    %v1587 = vsub.s32 0, %v1586
    %v1588 = vrot.slane %v406, %v1587
    %v1590 = vadd.f32 %v1582, %v1588
    %v1591 = vadd.f32 %v1583, %v1588
    %v1592 = vmul.f32 %v1590, 0.5
    %v1593 = vmul.f32 %v1591, 0.5
    %v1594 = vmul.f32 %v1590, 0.044715
    %v1595 = vmul.f32 %v1591, 0.044715
    %v1596 = vmul.f32 %v1594, %v1590
    %v1597 = vmul.f32 %v1595, %v1591
    %v1598 = vmul.f32 %v1596, %v1590
    %v1599 = vmul.f32 %v1597, %v1591
    %v1600 = vadd.f32 %v1590, %v1598
    %v1601 = vadd.f32 %v1591, %v1599
    %v1602 = vmul.f32 %v1600, 0.7978846
    %v1603 = vmul.f32 %v1601, 0.7978846
    %v1604 = vtanh.pop %v1602
    %v1605 = vtanh.pop %v1603
    %v1606 = vadd.f32 %v1604, 1.0
    %v1607 = vadd.f32 %v1605, 1.0
    %v1608 = vmul.f32 %v1592, %v1606
    %v1609 = vmul.f32 %v1593, %v1607
    %v1610 = vpack.c.bf16 %v1609, %v1608
    %v1627 = vunpack.c.l.b16 %v423
    %v1628 = vunpack.c.l.b16 %v424
    %v1629 = vunpack.c.l.b16 %v425
    %v1630 = vunpack.c.l.b16 %v426
    %v1631 = vunpack.c.l.b16 %v427
    %v1632 = vunpack.c.l.b16 %v428
    %v1633 = vunpack.c.l.b16 %v429
    %v1634 = vunpack.c.l.b16 %v430
    %v1635 = vunpack.c.l.b16 %v431
    %v1636 = vunpack.c.l.b16 %v432
    %v1637 = vunpack.c.l.b16 %v433
    %v1638 = vunpack.c.l.b16 %v434
    %v1639 = vunpack.c.l.b16 %v435
    %v1640 = vunpack.c.l.b16 %v436
    %v1641 = vunpack.c.l.b16 %v437
    %v1642 = vunpack.c.l.b16 %v438
    %v1643 = vpack.c.b16 %v1628, %v1627
    %v1644 = vpack.c.b16 %v1630, %v1629
    %v1645 = vpack.c.b16 %v1632, %v1631
    %v1646 = vpack.c.b16 %v1634, %v1633
    %v1647 = vpack.c.b16 %v1636, %v1635
    %v1648 = vpack.c.b16 %v1638, %v1637
    %v1649 = vpack.c.b16 %v1640, %v1639
    %v1650 = vpack.c.b16 %v1642, %v1641
    %1659 = vmatprep.subr.bf16.mxu0 0
    %1660 = vmatpush1.bf16.msra.mxu0 %v1643
    %1661 = vmatprep.subr.bf16.mxu0 0
    %1662 = vmatpush1.bf16.msra.mxu0 %v1644
    %1663 = vmatprep.subr.bf16.mxu0 0
    %1664 = vmatpush1.bf16.msra.mxu0 %v1645
    %1665 = vmatprep.subr.bf16.mxu0 0
    %1666 = vmatpush1.bf16.msra.mxu0 %v1646
    %1667 = vmatprep.subr.bf16.mxu0 0
    %1668 = vmatpush1.bf16.msra.mxu0 %v1647
    %1669 = vmatprep.subr.bf16.mxu0 0
    %1670 = vmatpush1.bf16.msra.mxu0 %v1648
    %1671 = vmatprep.subr.bf16.mxu0 0
    %1672 = vmatpush1.bf16.msra.mxu0 %v1649
    %1673 = vmatprep.subr.bf16.mxu0 0
    %1674 = vmatpush1.bf16.msra.mxu0 %v1650
    %1675 = vmatprep.subr.bf16.mxu0 0
    %1676 = vmatpush1.bf16.msra.mxu0 0
    %1677 = vmatprep.subr.bf16.mxu0 0
    %1678 = vmatpush1.bf16.msra.mxu0 0
    %1679 = vmatprep.subr.bf16.mxu0 0
    %1680 = vmatpush1.bf16.msra.mxu0 0
    %1681 = vmatprep.subr.bf16.mxu0 0
    %1682 = vmatpush1.bf16.msra.mxu0 0
    %1683 = vmatprep.subr.bf16.mxu0 0
    %1684 = vmatpush1.bf16.msra.mxu0 0
    %1685 = vmatprep.subr.bf16.mxu0 0
    %1686 = vmatpush1.bf16.msra.mxu0 0
    %1687 = vmatprep.subr.bf16.mxu0 0
    %1688 = vmatpush1.bf16.msra.mxu0 0
    %1689 = vmatprep.subr.bf16.mxu0 0
    %1690 = vmatpush1.bf16.msra.mxu0 0
    %1691 = vmatprep.mubr.bf16.mxu0 0
    %1692 = vmatmul.mubr.bf16.gmra.mrb[0].mxu0 %v1610
    %v1693 = vpop.f32.mrb[0].mxu0
    %v1694 = vadd.f32 0.0, %v1693
    %v1695 = vpop.f32.mrb[0].mxu0
    %v1696 = vpop.f32.mrb[0].mxu0
    %v1697 = vadd.f32 0.0, %v1696
    %v1698 = vpop.f32.mrb[0].mxu0
    %1699 = vdwg.mxu0
    %v1716 = vunpack.c.l.b16 %v407
    %v1717 = vunpack.c.l.b16 %v408
    %v1718 = vunpack.c.l.b16 %v409
    %v1719 = vunpack.c.l.b16 %v410
    %v1720 = vunpack.c.l.b16 %v411
    %v1721 = vunpack.c.l.b16 %v412
    %v1722 = vunpack.c.l.b16 %v413
    %v1723 = vunpack.c.l.b16 %v414
    %v1724 = vunpack.c.l.b16 %v415
    %v1725 = vunpack.c.l.b16 %v416
    %v1726 = vunpack.c.l.b16 %v417
    %v1727 = vunpack.c.l.b16 %v418
    %v1728 = vunpack.c.l.b16 %v419
    %v1729 = vunpack.c.l.b16 %v420
    %v1730 = vunpack.c.l.b16 %v421
    %v1731 = vunpack.c.l.b16 %v422
    %v1732 = vpack.c.b16 %v1717, %v1716
    %v1733 = vpack.c.b16 %v1719, %v1718
    %v1734 = vpack.c.b16 %v1721, %v1720
    %v1735 = vpack.c.b16 %v1723, %v1722
    %v1736 = vpack.c.b16 %v1725, %v1724
    %v1737 = vpack.c.b16 %v1727, %v1726
    %v1738 = vpack.c.b16 %v1729, %v1728
    %v1739 = vpack.c.b16 %v1731, %v1730
    %1748 = vmatprep.subr.bf16.mxu0 0
    %1749 = vmatpush1.bf16.msra.mxu0 %v1732
    %1750 = vmatprep.subr.bf16.mxu0 0
    %1751 = vmatpush1.bf16.msra.mxu0 %v1733
    %1752 = vmatprep.subr.bf16.mxu0 0
    %1753 = vmatpush1.bf16.msra.mxu0 %v1734
    %1754 = vmatprep.subr.bf16.mxu0 0
    %1755 = vmatpush1.bf16.msra.mxu0 %v1735
    %1756 = vmatprep.subr.bf16.mxu0 0
    %1757 = vmatpush1.bf16.msra.mxu0 %v1736
    %1758 = vmatprep.subr.bf16.mxu0 0
    %1759 = vmatpush1.bf16.msra.mxu0 %v1737
    %1760 = vmatprep.subr.bf16.mxu0 0
    %1761 = vmatpush1.bf16.msra.mxu0 %v1738
    %1762 = vmatprep.subr.bf16.mxu0 0
    %1763 = vmatpush1.bf16.msra.mxu0 %v1739
    %1764 = vmatprep.subr.bf16.mxu0 0
    %1765 = vmatpush1.bf16.msra.mxu0 0
    %1766 = vmatprep.subr.bf16.mxu0 0
    %1767 = vmatpush1.bf16.msra.mxu0 0
    %1768 = vmatprep.subr.bf16.mxu0 0
    %1769 = vmatpush1.bf16.msra.mxu0 0
    %1770 = vmatprep.subr.bf16.mxu0 0
    %1771 = vmatpush1.bf16.msra.mxu0 0
    %1772 = vmatprep.subr.bf16.mxu0 0
    %1773 = vmatpush1.bf16.msra.mxu0 0
    %1774 = vmatprep.subr.bf16.mxu0 0
    %1775 = vmatpush1.bf16.msra.mxu0 0
    %1776 = vmatprep.subr.bf16.mxu0 0
    %1777 = vmatpush1.bf16.msra.mxu0 0
    %1778 = vmatprep.subr.bf16.mxu0 0
    %1779 = vmatpush1.bf16.msra.mxu0 0
    %1780 = vmatprep.mubr.bf16.mxu0 0
    %1781 = vmatmul.mubr.bf16.gmra.mrb[0].mxu0 %v719
    %v1782 = vpop.f32.mrb[0].mxu0
    %v1783 = vadd.f32 %v1694, %v1782
    %v1784 = vpop.f32.mrb[0].mxu0
    %v1785 = vpop.f32.mrb[0].mxu0
    %v1786 = vadd.f32 %v1697, %v1785
    %v1787 = vpop.f32.mrb[0].mxu0
    %1788 = vdwg.mxu0
    %v1790 = vlaneseq
    %v1791 = vshrl.u32 %v1790, 7
    %v1792 = vsub.s32 0, %v1791
    %v1793 = vrot.slane %v439, %v1792
    %v1795 = vadd.f32 %v1783, %v1793
    %v1796 = vadd.f32 %v1786, %v1793
    %1797 = vadd.xlane.f32.xlu0 %v1795
    %v1798 = vpop.xlane.xlu0 %1797
    %1799 = vadd.xlane.f32.xlu0 %v1796
    %v1800 = vpop.xlane.xlu0 %1799
    %v1801 = vmul.f32 %v1798, 0.015625
    %v1802 = vmul.f32 %v1800, 0.015625
    %v1803 = vsub.f32 %v1795, %v1801
    %v1804 = vsub.f32 %v1796, %v1802
    %v1805 = vsel %vm1067, %v1803, 0.0
    %v1806 = vsel %vm1067, %v1804, 0.0
    %v1807 = vmul.f32 %v1805, %v1805
    %v1808 = vmul.f32 %v1806, %v1806
    %1809 = vadd.xlane.f32.xlu0 %v1807
    %v1810 = vpop.xlane.xlu0 %1809
    %1811 = vadd.xlane.f32.xlu0 %v1808
    %v1812 = vpop.xlane.xlu0 %1811
    %v1813 = vmul.f32 %v1810, 0.015625
    %v1814 = vmul.f32 %v1812, 0.015625
    %v1815 = vadd.f32 %v1813, 1e-05
    %v1816 = vadd.f32 %v1814, 1e-05
    %v1817 = vrsqrt.pop %v1815
    %v1818 = vrsqrt.pop %v1816
    %v1819 = vmul.f32 %v1805, %v1817
    %v1820 = vmul.f32 %v1806, %v1818
    %v1822 = vlaneseq
    %v1823 = vshrl.u32 %v1822, 7
    %v1824 = vsub.s32 0, %v1823
    %v1825 = vrot.slane %v440, %v1824
    %v1827 = vmul.f32 %v1819, %v1825
    %v1828 = vmul.f32 %v1820, %v1825
    %v1830 = vlaneseq
    %v1831 = vshrl.u32 %v1830, 7
    %v1832 = vsub.s32 0, %v1831
    %v1833 = vrot.slane %v441, %v1832
    %v1835 = vadd.f32 %v1827, %v1833
    %v1836 = vadd.f32 %v1828, %v1833
    %v1837 = vmul.f32 %v1835, 0.5
    %v1838 = vmul.f32 %v1836, 0.5
    %v1839 = vmul.f32 %v1835, 0.044715
    %v1840 = vmul.f32 %v1836, 0.044715
    %v1841 = vmul.f32 %v1839, %v1835
    %v1842 = vmul.f32 %v1840, %v1836
    %v1843 = vmul.f32 %v1841, %v1835
    %v1844 = vmul.f32 %v1842, %v1836
    %v1845 = vadd.f32 %v1835, %v1843
    %v1846 = vadd.f32 %v1836, %v1844
    %v1847 = vmul.f32 %v1845, 0.7978846
    %v1848 = vmul.f32 %v1846, 0.7978846
    %v1849 = vtanh.pop %v1847
    %v1850 = vtanh.pop %v1848
    %v1851 = vadd.f32 %v1849, 1.0
    %v1852 = vadd.f32 %v1850, 1.0
    %v1853 = vmul.f32 %v1837, %v1851
    %v1854 = vmul.f32 %v1838, %v1852
    %1855 = vst [vmem:[#allocation19] sm:$0xff] %v1853
    %1856 = vst [vmem:[#allocation19 + $0x8] sm:$0xff] %v1854
    // Predicated region
    $region162: #{tpu_custom_call.1} parent=1 // pred_check
      _
    $region163: #{tpu_custom_call.1} parent=1 // pred_check_branch
      %1858 = sbr.rel (0) target = $region165
    $region164: #{tpu_custom_call.1} parent=1 // pred_region
      %s1860 = ssub.s32 256, 256
      %1861 = vsyncadd [#allocation4], %s1860
      %s1862 = sshll.u32 [#allocation19], 4
      %s1863 = int_to_ptr.vmem [resolvable:$true] %s1862
      %1868 = dma.vmem_to_hbm [thread:$0]  %s1863, 256, %s61, [#allocation4], 128, 128, 8
    $region165: #{tpu_custom_call.1} parent=1 // pred_fallthru
      _
    // Predicated region
    $region166: #{tpu_custom_call.1} parent=1 // pred_check
      _
    $region167: #{tpu_custom_call.1} parent=1 // pred_check_branch
      %1870 = sbr.rel (0) target = $region169
    $region168: #{tpu_custom_call.1} parent=1 // pred_region
      %1871 = dma.done [#allocation4], 256
    $region169: #{tpu_custom_call.1} parent=1 // pred_fallthru
      _
    %1872 = vsyncpa [#allocation3], 1
    %1873 = vsyncpa [#allocation6], 1
    %1874 = vsyncpa [#allocation9], 1
    %1875 = vsyncpa [#allocation12], 1
    %1876 = vsyncpa [#allocation15], 1
    %1877 = vsyncpa [#allocation18], 1
    %1878 = vsyncpa [#allocation4], 1

</llo_original>
